<compile_context>
chip_gen: v6e
topology: v6e:2x2x1
jax: 0.10.0
libtpu: 0.0.40
codegen_flags: <defaults>
</compile_context>

<pallas_src>
import jax
import jax.numpy as jnp
from jax import lax
from jax.experimental import pallas as pl
from jax.experimental.pallas import tpu as pltpu


_OP_DTYPE = jnp.bfloat16  # MXU operand dtype; accumulation stays f32.


# ---------------------------------------------------------------------------
# helpers
# ---------------------------------------------------------------------------
def _round_up(x, n):
    return ((x + n - 1) // n) * n


def _pick_rows(n_rows, row_len, target):
    """Largest divisor t of n_rows with t * row_len <= target (min 1)."""
    best = 1
    for t in range(1, n_rows + 1):
        if n_rows % t == 0 and t * row_len <= target:
            best = t
    return best


def _upsample2_nearest(x):  # NHWC nearest x2 (reference path only)
    x = jnp.repeat(x, 2, axis=1)
    x = jnp.repeat(x, 2, axis=2)
    return x


# ---------------------------------------------------------------------------
# 1x1 convolution: flattened (M, Cin) @ (Cin, Cout) matmul on the MXU
# ---------------------------------------------------------------------------
def _conv1x1(x_nhwc, w, b, target_rows=2048):
    B, H, W, Cin = x_nhwc.shape
    Cout = w.shape[1]
    M = B * H * W
    if M >= target_rows:
        TM = target_rows
    elif M >= 8:
        TM = (M // 8) * 8  # possible tail block handled by Pallas masking
    else:
        TM = M
    x2 = x_nhwc.reshape(M, Cin)
    wb = w.astype(_OP_DTYPE)
    b2 = b.reshape(1, Cout)

    def kernel(x_ref, w_ref, b_ref, o_ref):
        y = jnp.dot(x_ref[...].astype(_OP_DTYPE), w_ref[...],
                    preferred_element_type=jnp.float32) + b_ref[...]
        o_ref[...] = y.astype(o_ref.dtype)

    out = pl.pallas_call(
        kernel,
        out_shape=jax.ShapeDtypeStruct((M, Cout), x_nhwc.dtype),
        grid=(pl.cdiv(M, TM),),
        in_specs=[
            pl.BlockSpec((TM, Cin), lambda i: (i, 0)),
            pl.BlockSpec((Cin, Cout), lambda i: (0, 0)),
            pl.BlockSpec((1, Cout), lambda i: (0, 0)),
        ],
        out_specs=pl.BlockSpec((TM, Cout), lambda i: (i, 0)),
        compiler_params=pltpu.CompilerParams(dimension_semantics=("parallel",)),
    )(x2, wb, b2)
    return out.reshape(B, H, W, Cout)


# ---------------------------------------------------------------------------
# 1x1 conv + fused nearest-x2-upsampled residual add:
#   y = conv1x1(x) + nearest_up2(res_half)
# The H-direction duplication of the upsample is fused (free broadcast over
# the row-pair axis); the W-direction duplication is done once at the wrapper
# by XLA on the half-height map.  No dup matmul / per-step iota in the kernel.
# ---------------------------------------------------------------------------
def _conv1x1_add_up2(x_nhwc, res_half, w, b, target_rows=1024):
    B, H, W, Cin = x_nhwc.shape
    Cout = w.shape[1]
    Hh, Wh = H // 2, W // 2
    assert res_half.shape == (B, Hh, Wh, Cout), (res_half.shape,)
    assert W % 8 == 0, "W must be a multiple of 8 for the fused upsample-add"

    res_w = jnp.repeat(res_half, 2, axis=2)        # (B, Hh, W, Cout)
    THh = _pick_rows(Hh, 2 * W, target_rows)       # half-rows per grid step
    RW = 2 * THh * W                               # flat output rows per step
    wb = w.astype(_OP_DTYPE)
    b2 = b.reshape(1, Cout)

    def kernel(x_ref, r_ref, w_ref, b_ref, o_ref):
        x2 = x_ref[...].reshape(RW, Cin).astype(_OP_DTYPE)   # W%8==0: free view
        y = jnp.dot(x2, w_ref[...], preferred_element_type=jnp.float32) + b_ref[...]
        r = r_ref[...].astype(jnp.float32)                   # (THh, W, Cout)
        y4 = y.reshape(THh, 2, W, Cout) + r[:, None, :, :]   # fused H-dup add
        o_ref[...] = y4.reshape(2 * THh, W, Cout).astype(o_ref.dtype)

    out = pl.pallas_call(
        kernel,
        out_shape=jax.ShapeDtypeStruct((B, H, W, Cout), x_nhwc.dtype),
        grid=(B, Hh // THh),
        in_specs=[
            pl.BlockSpec((None, 2 * THh, W, Cin), lambda bi, i: (bi, i, 0, 0)),
            pl.BlockSpec((None, THh, W, Cout), lambda bi, i: (bi, i, 0, 0)),
            pl.BlockSpec((Cin, Cout), lambda bi, i: (0, 0)),
            pl.BlockSpec((1, Cout), lambda bi, i: (0, 0)),
        ],
        out_specs=pl.BlockSpec((None, 2 * THh, W, Cout),
                               lambda bi, i: (bi, i, 0, 0)),
        compiler_params=pltpu.CompilerParams(
            dimension_semantics=("parallel", "parallel")),
    )(x_nhwc, res_w, wb, b2)
    return out


# ---------------------------------------------------------------------------
# stride-2 1x1 conv + SiLU.  The subsample is a free row-major reshape at the
# wrapper + a BlockSpec window (even input rows) + an in-kernel lane slice
# (even columns) -- no selection matmul, no strided gather passes in HBM.
# ---------------------------------------------------------------------------
def _conv1x1_s2_silu(x_nhwc, w, b, target_rows=1024):
    B, H, W, Cin = x_nhwc.shape
    Cout = w.shape[1]
    Ho, Wo = H // 2, W // 2
    assert Wo % 8 == 0, "W//2 must be a multiple of 8 for the stride-2 kernel"

    # (b, 2ho+r, 2wo+s, c) -> (b, ho, r*Wo+wo, s*Cin+c); r=0, s=0 is the subsample
    xr = x_nhwc.reshape(B, Ho, 2 * Wo, 2 * Cin)
    THo = _pick_rows(Ho, Wo, target_rows)
    wb = w.astype(_OP_DTYPE)
    b2 = b.reshape(1, Cout)

    def kernel(x_ref, w_ref, b_ref, o_ref):
        x = x_ref[...][:, :, :Cin]                       # even columns (lane slice)
        x2 = x.reshape(THo * Wo, Cin).astype(_OP_DTYPE)  # Wo%8==0: free view
        y = jnp.dot(x2, w_ref[...], preferred_element_type=jnp.float32) + b_ref[...]
        y = y * jax.nn.sigmoid(y)                        # SiLU (EUP sigmoid)
        o_ref[...] = y.reshape(THo, Wo, Cout).astype(o_ref.dtype)

    out = pl.pallas_call(
        kernel,
        out_shape=jax.ShapeDtypeStruct((B, Ho, Wo, Cout), x_nhwc.dtype),
        grid=(B, Ho // THo),
        in_specs=[
            # dim 2 block index 0 -> first Wo entries == even input rows only
            pl.BlockSpec((None, THo, Wo, 2 * Cin), lambda bi, i: (bi, i, 0, 0)),
            pl.BlockSpec((Cin, Cout), lambda bi, i: (0, 0)),
            pl.BlockSpec((1, Cout), lambda bi, i: (0, 0)),
        ],
        out_specs=pl.BlockSpec((None, THo, Wo, Cout), lambda bi, i: (bi, i, 0, 0)),
        compiler_params=pltpu.CompilerParams(
            dimension_semantics=("parallel", "parallel")),
    )(xr, wb, b2)
    return out


# ---------------------------------------------------------------------------
# 3x3 / stride 1 / pad 1 convolution, optional fused elementwise add on the
# input.  Row-tiled with a one-row halo; taps packed along K (3 matmuls of
# K=3*Cin built from pltpu.roll'ed horizontal shifts).
# ---------------------------------------------------------------------------
def _conv3x3(x_nhwc, w, b, add=None, target_rows=2048):
    B, H, W, Cin = x_nhwc.shape
    Cout = w.shape[-1]
    M = H * W
    has_add = add is not None

    if W % 8 == 0:
        TH = _pick_rows(H, W, target_rows)  # rows per tile (divides H)
    else:
        TH = H                              # tiny/odd-width plane: single tile
    MT = TH * W
    n_tiles = H // TH
    multi = n_tiles > 1
    PAD = W if W % 8 == 0 else _round_up(W, 8)   # aligned halo / zero region
    SR = PAD + MT + PAD                          # scratch rows
    # bf16 scratch when all offsets are aligned; f32 otherwise (unaligned reads
    # on the tiny odd-width plane use the previously validated f32 path).
    cdt = _OP_DTYPE if W % 8 == 0 else jnp.float32

    x2 = x_nhwc.reshape(B, M, Cin)
    a2 = add.reshape(B, M, Cin) if has_add else None
    wcat = w.reshape(3, 3 * Cin, Cout).astype(_OP_DTYPE)   # K packed per kh
    b2 = b.reshape(1, Cout)

    def kernel(*refs):
        it = iter(refs)
        x_ref = next(it)
        a_ref = next(it) if has_add else None
        if multi:
            topx_ref = next(it)
            botx_ref = next(it)
            topa_ref = next(it) if has_add else None
            bota_ref = next(it) if has_add else None
        w_ref = next(it)
        b_ref = next(it)
        o_ref = next(it)
        xcat = next(it)

        def put(row0, v):
            """Store v and its +-1 horizontal shifts into the packed scratch."""
            R = v.shape[0]
            colm = lax.broadcasted_iota(jnp.int32, (R, 1), 0) % W
            s0 = jnp.where(colm == 0, 0.0, pltpu.roll(v, 1, axis=0))
            s2 = jnp.where(colm == W - 1, 0.0, pltpu.roll(v, R - 1, axis=0))
            xcat[row0:row0 + R, 0:Cin] = s0.astype(cdt)
            xcat[row0:row0 + R, Cin:2 * Cin] = v.astype(cdt)
            xcat[row0:row0 + R, 2 * Cin:3 * Cin] = s2.astype(cdt)

        x = x_ref[...].astype(jnp.float32)
        if has_add:
            x = x + a_ref[...].astype(jnp.float32)       # fused residual add
        put(PAD, x)

        if multi:
            i = pl.program_id(1)
            nt = pl.num_programs(1)
            top = topx_ref[...].astype(jnp.float32)
            bot = botx_ref[...].astype(jnp.float32)
            if has_add:
                top = top + topa_ref[...].astype(jnp.float32)
                bot = bot + bota_ref[...].astype(jnp.float32)
            top = top * (i > 0).astype(jnp.float32)       # zero pad @ image top
            bot = bot * (i < nt - 1).astype(jnp.float32)  # zero pad @ image bottom
            put(PAD - W, top)
            put(PAD + MT, bot)
        else:
            zeros = jnp.zeros((PAD, 3 * Cin), cdt)
            xcat[0:PAD, :] = zeros
            xcat[PAD + MT:SR, :] = zeros

        acc = jnp.zeros((MT, Cout), jnp.float32)
        for kh in range(3):
            start = PAD - W + kh * W
            acc = acc + jnp.dot(
                xcat[start:start + MT, :].astype(_OP_DTYPE), w_ref[kh],
                preferred_element_type=jnp.float32)
        o_ref[...] = (acc + b_ref[...]).astype(o_ref.dtype)

    in_specs = [pl.BlockSpec((None, MT, Cin), lambda bi, i: (bi, i, 0))]
    args = [x2]
    if has_add:
        in_specs.append(pl.BlockSpec((None, MT, Cin), lambda bi, i: (bi, i, 0)))
        args.append(a2)
    if multi:
        # one-image-row halo blocks; index_map clamps at the image border
        top_map = lambda bi, i: (bi, jnp.maximum(i * TH - 1, 0), 0)
        bot_map = lambda bi, i: (bi, jnp.minimum(i * TH + TH, H - 1), 0)
        in_specs += [pl.BlockSpec((None, W, Cin), top_map),
                     pl.BlockSpec((None, W, Cin), bot_map)]
        args += [x2, x2]
        if has_add:
            in_specs += [pl.BlockSpec((None, W, Cin), top_map),
                         pl.BlockSpec((None, W, Cin), bot_map)]
            args += [a2, a2]
    in_specs += [
        pl.BlockSpec((3, 3 * Cin, Cout), lambda bi, i: (0, 0, 0)),
        pl.BlockSpec((1, Cout), lambda bi, i: (0, 0)),
    ]
    args += [wcat, b2]

    out = pl.pallas_call(
        kernel,
        out_shape=jax.ShapeDtypeStruct((B, M, Cout), x_nhwc.dtype),
        grid=(B, n_tiles),
        in_specs=in_specs,
        out_specs=pl.BlockSpec((None, MT, Cout), lambda bi, i: (bi, i, 0)),
        scratch_shapes=[pltpu.VMEM((SR, 3 * Cin), cdt)],
        compiler_params=pltpu.CompilerParams(
            dimension_semantics=("parallel", "parallel")),
    )(*args)
    return out.reshape(B, H, W, Cout)


# ---------------------------------------------------------------------------
# parameters (same shapes as the torch module; conv weights stored NHWC-style)
# ---------------------------------------------------------------------------
def init_params(key, C3_size, C4_size, C5_size, feature_size):
    ks = jax.random.split(key, 16)
    f = feature_size

    def w1(k, cin, cout):   # 1x1 conv weight as (Cin, Cout)
        return jax.random.normal(k, (cin, cout), jnp.float32) * 0.05

    def w3(k, cin, cout):   # 3x3 conv weight as (3, 3, Cin, Cout)
        return jax.random.normal(k, (3, 3, cin, cout), jnp.float32) * 0.05

    def bias(k, cout):
        return jax.random.normal(k, (cout,), jnp.float32) * 0.01

    # TODO(synk): P4_2 is RepNCSPELAN4CBAM in the PyTorch spec; its definition
    # is not provided, so it is approximated by the conv stack below (3x3 conv
    # + stride-2 1x1/SiLU bottom-up combine, same structure as the previously
    # validated version of this kernel).
    return {
        "P5_1_w": w1(ks[0], C5_size, f), "P5_1_b": bias(ks[1], f),
        "P5_2_w": w3(ks[2], f, f),       "P5_2_b": bias(ks[3], f),
        "P4_1_w": w1(ks[4], C4_size, f), "P4_1_b": bias(ks[5], f),
        "P4_2_w": w3(ks[6], f, f),       "P4_2_b": bias(ks[7], f),
        "P3_1_w": w1(ks[8], C3_size, f), "P3_1_b": bias(ks[9], f),
        "P3_2_w": w3(ks[10], f, f),      "P3_2_b": bias(ks[11], f),
        "P3_2_up_w": w1(ks[12], f, f),   "P3_2_up_b": bias(ks[13], f),
        "P4_combine_w": w3(ks[14], f, f), "P4_combine_b": bias(ks[15], f),
    }


# ---------------------------------------------------------------------------
# decoder forward (Pallas)
# ---------------------------------------------------------------------------
@jax.jit
def decoder_forward(params, C3, C4, C5):
    """Inputs NCHW (PyTorch convention); returns [P3_x, P4_x, P5_x] in NCHW."""
    to_nhwc = lambda t: jnp.transpose(t, (0, 2, 3, 1))
    to_nchw = lambda t: jnp.transpose(t, (0, 3, 1, 2))
    c3, c4, c5 = to_nhwc(C3), to_nhwc(C4), to_nhwc(C5)

    # P5 branch
    p5 = _conv1x1(c5, params["P5_1_w"], params["P5_1_b"])
    p5_out = _conv3x3(p5, params["P5_2_w"], params["P5_2_b"])

    # P4 branch: lateral 1x1 conv + fused nearest-x2 upsampled P5 residual
    p4 = _conv1x1_add_up2(c4, p5, params["P4_1_w"], params["P4_1_b"])
    p4_mid = _conv3x3(p4, params["P4_2_w"], params["P4_2_b"])

    # P3 branch
    p3 = _conv1x1_add_up2(c3, p4, params["P3_1_w"], params["P3_1_b"])
    p3_out = _conv3x3(p3, params["P3_2_w"], params["P3_2_b"])

    # bottom-up path: stride-2 1x1 conv + SiLU, then combine
    # (the `p4_mid + p3_up` add is fused into the conv3x3 kernel).
    p3_up = _conv1x1_s2_silu(p3_out, params["P3_2_up_w"], params["P3_2_up_b"])
    p4_out = _conv3x3(p4_mid, params["P4_combine_w"], params["P4_combine_b"],
                      add=p3_up)

    # NHWC->NCHW kept only for PyTorch interface parity.
    return [to_nchw(p3_out), to_nchw(p4_out), to_nchw(p5_out)]


# ---------------------------------------------------------------------------
# pure-JAX reference (correctness check only, f32 end to end)
# ---------------------------------------------------------------------------
def _ref_forward(params, C3, C4, C5):
    to_nhwc = lambda t: jnp.transpose(t, (0, 2, 3, 1))
    to_nchw = lambda t: jnp.transpose(t, (0, 3, 1, 2))

    def conv(x, w, b, stride, pad):
        y = jax.lax.conv_general_dilated(
            x, w, (stride, stride), pad,
            dimension_numbers=("NHWC", "HWIO", "NHWC"))
        return y + b

    c3, c4, c5 = to_nhwc(C3), to_nhwc(C4), to_nhwc(C5)
    as4d = lambda w: w.reshape(1, 1, *w.shape)

    p5 = conv(c5, as4d(params["P5_1_w"]), params["P5_1_b"], 1, "VALID")
    p5_up = _upsample2_nearest(p5)
    p5_out = conv(p5, params["P5_2_w"], params["P5_2_b"], 1, ((1, 1), (1, 1)))

    p4 = conv(c4, as4d(params["P4_1_w"]), params["P4_1_b"], 1, "VALID") + p5_up
    p4_up = _upsample2_nearest(p4)
    p4_mid = conv(p4, params["P4_2_w"], params["P4_2_b"], 1, ((1, 1), (1, 1)))

    p3 = conv(c3, as4d(params["P3_1_w"]), params["P3_1_b"], 1, "VALID") + p4_up
    p3_out = conv(p3, params["P3_2_w"], params["P3_2_b"], 1, ((1, 1), (1, 1)))

    p3_up = conv(p3_out, as4d(params["P3_2_up_w"]), params["P3_2_up_b"],
                 2, "VALID")
    p3_up = p3_up * jax.nn.sigmoid(p3_up)  # SiLU

    p4_out = conv(p4_mid + p3_up, params["P4_combine_w"],
                  params["P4_combine_b"], 1, ((1, 1), (1, 1)))

    return [to_nchw(p3_out), to_nchw(p4_out), to_nchw(p5_out)]


# ---------------------------------------------------------------------------
if __name__ == "__main__":
    key = jax.random.PRNGKey(0)
    k_p, k3, k4, k5, k_u = jax.random.split(key, 5)

    B = 2
    C3_size, C4_size, C5_size, feature_size = 4, 6, 8, 32
    H3 = W3 = 16  # C4 is 8x8, C5 is 4x4 (standard FPN pyramid)

    C3 = jax.random.normal(k3, (B, C3_size, H3, W3), jnp.float32)
    C4 = jax.random.normal(k4, (B, C4_size, H3 // 2, W3 // 2), jnp.float32)
    C5 = jax.random.normal(k5, (B, C5_size, H3 // 4, W3 // 4), jnp.float32)

    params = init_params(k_p, C3_size, C4_size, C5_size, feature_size)

    RTOL = ATOL = 3e-2  # bf16 MXU operands vs f32 XLA reference

    # --- unit check 1: row-tiled conv3x3 with halo + fused add (forced multi-tile)
    ku = jax.random.split(k_u, 8)
    xt = jax.random.normal(ku[0], (B, 16, 16, 32), jnp.float32)
    at = jax.random.normal(ku[1], (B, 16, 16, 32), jnp.float32) * 0.5
    wt = jax.random.normal(ku[2], (3, 3, 32, 32), jnp.float32) * 0.05
    bt = jax.random.normal(ku[3], (32,), jnp.float32) * 0.01
    got = _conv3x3(xt, wt, bt, add=at, target_rows=64)  # TH=4 -> 4 row tiles
    ref = lax.conv_general_dilated(
        xt + at, wt, (1, 1), ((1, 1), (1, 1)),
        dimension_numbers=("NHWC", "HWIO", "NHWC")) + bt
    assert jnp.allclose(got, ref, rtol=RTOL, atol=ATOL), \
        float(jnp.max(jnp.abs(got - ref)))

    # --- unit check 2: fused upsample-add 1x1 conv (forced multi-tile)
    x1 = jax.random.normal(ku[4], (B, 16, 16, 4), jnp.float32)
    rh = jax.random.normal(ku[5], (B, 8, 8, 32), jnp.float32)
    w1t = jax.random.normal(ku[6], (4, 32), jnp.float32) * 0.05
    b1t = jax.random.normal(ku[7], (32,), jnp.float32) * 0.01
    got = _conv1x1_add_up2(x1, rh, w1t, b1t, target_rows=64)  # THh=2 -> 4 tiles
    ref = jnp.einsum("bhwc,co->bhwo", x1, w1t) + b1t + _upsample2_nearest(rh)
    assert jnp.allclose(got, ref, rtol=RTOL, atol=ATOL), \
        float(jnp.max(jnp.abs(got - ref)))

    # --- full decoder vs f32 XLA reference
    outs = decoder_forward(params, C3, C4, C5)
    outs = [jax.block_until_ready(o) for o in outs]

    refs = _ref_forward(params, C3, C4, C5)
    for o, r in zip(outs, refs):
        assert o.shape == r.shape, (o.shape, r.shape)
        err = float(jnp.max(jnp.abs(o - r)))
        assert jnp.allclose(o, r, rtol=RTOL, atol=ATOL), err

    print("KERNEL_OK")
</pallas_src>

<mosaic_0001>
module attributes {stable_mosaic.version = 11 : i64} {
  func.func @kernel(%arg0: i32, %arg1: i32, %arg2: memref<1x64x32xf32, #tpu.memory_space<vmem>>, %arg3: memref<1x64x32xf32, #tpu.memory_space<vmem>>, %arg4: memref<1x16x32xf32, #tpu.memory_space<vmem>>, %arg5: memref<1x16x32xf32, #tpu.memory_space<vmem>>, %arg6: memref<1x16x32xf32, #tpu.memory_space<vmem>>, %arg7: memref<1x16x32xf32, #tpu.memory_space<vmem>>, %arg8: memref<3x96x32xbf16, #tpu.memory_space<vmem>>, %arg9: memref<1x32xf32, #tpu.memory_space<vmem>>, %arg10: memref<1x64x32xf32, #tpu.memory_space<vmem>>, %arg11: memref<96x96xbf16, #tpu.memory_space<vmem>>) attributes {dimension_semantics = [#tpu.dimension_semantics<parallel>, #tpu.dimension_semantics<parallel>], iteration_bounds = array<i64: 2, 4>, scalar_prefetch = 0 : i64, scratch_operands = 1 : i64, tpu.core_type = #tpu.core_type<tc>, window_params = [{transform_indices = @transform_0, window_bounds = array<i64: 1, 64, 32>}, {transform_indices = @transform_1, window_bounds = array<i64: 1, 64, 32>}, {transform_indices = @transform_2, window_bounds = array<i64: 1, 16, 32>}, {transform_indices = @transform_3, window_bounds = array<i64: 1, 16, 32>}, {transform_indices = @transform_4, window_bounds = array<i64: 1, 16, 32>}, {transform_indices = @transform_5, window_bounds = array<i64: 1, 16, 32>}, {pipeline_mode = #tpu.pipeline_mode<synchronous>, transform_indices = @transform_6, window_bounds = array<i64: 3, 96, 32>}, {pipeline_mode = #tpu.pipeline_mode<synchronous>, transform_indices = @transform_7, window_bounds = array<i64: 1, 32>}, {transform_indices = @transform_8, window_bounds = array<i64: 1, 64, 32>}]} {
    %c0 = arith.constant 0 : index
    %c0_0 = arith.constant 0 : index
    %c0_1 = arith.constant 0 : index
    %0 = vector.load %arg2[%c0, %c0_0, %c0_1] : memref<1x64x32xf32, #tpu.memory_space<vmem>>, vector<1x64x32xf32>
    %1 = vector.shape_cast %0 : vector<1x64x32xf32> to vector<64x32xf32>
    %c0_2 = arith.constant 0 : index
    %c0_3 = arith.constant 0 : index
    %c0_4 = arith.constant 0 : index
    %2 = vector.load %arg3[%c0_2, %c0_3, %c0_4] : memref<1x64x32xf32, #tpu.memory_space<vmem>>, vector<1x64x32xf32>
    %3 = vector.shape_cast %2 : vector<1x64x32xf32> to vector<64x32xf32>
    %4 = arith.addf %1, %3 : vector<64x32xf32>
    %5 = tpu.iota {dimensions = array<i32: 0>} : vector<64x1xi32>
    %c16_i32 = arith.constant 16 : i32
    %c0_i32 = arith.constant 0 : i32
    %6 = arith.cmpi eq, %c16_i32, %c0_i32 : i32
    %c1_i32 = arith.constant 1 : i32
    %7 = arith.select %6, %c1_i32, %c16_i32 : i32
    %8 = vector.broadcast %7 : i32 to vector<64x1xi32>
    %9 = arith.remsi %5, %8 : vector<64x1xi32>
    %c0_i32_5 = arith.constant 0 : i32
    %10 = vector.broadcast %c0_i32_5 : i32 to vector<64x1xi32>
    %11 = arith.cmpi ne, %9, %10 : vector<64x1xi32>
    %c0_i32_6 = arith.constant 0 : i32
    %12 = vector.broadcast %c0_i32_6 : i32 to vector<64x1xi32>
    %13 = arith.cmpi slt, %9, %12 : vector<64x1xi32>
    %c0_i32_7 = arith.constant 0 : i32
    %14 = arith.cmpi slt, %7, %c0_i32_7 : i32
    %15 = vector.broadcast %14 : i1 to vector<64x1xi1>
    %16 = vector.broadcast %15 : vector<64x1xi1> to vector<64x1xi1>
    %17 = arith.xori %13, %16 : vector<64x1xi1>
    %18 = arith.andi %17, %11 : vector<64x1xi1>
    %19 = vector.broadcast %7 : i32 to vector<64x1xi32>
    %20 = arith.addi %9, %19 : vector<64x1xi32>
    %21 = arith.select %18, %20, %9 : vector<64x1xi1>, vector<64x1xi32>
    %c0_i32_8 = arith.constant 0 : i32
    %22 = vector.broadcast %c0_i32_8 : i32 to vector<64x1xi32>
    %23 = arith.cmpi eq, %21, %22 : vector<64x1xi32>
    %c1_i32_9 = arith.constant 1 : i32
    %24 = tpu.dynamic_rotate %4 by %c1_i32_9 dim 0 : vector<64x32xf32>, i32 -> vector<64x32xf32>
    %cst = arith.constant 0.000000e+00 : f32
    %25 = vector.shape_cast %23 : vector<64x1xi1> to vector<64x1xi1>
    %26 = vector.broadcast %25 : vector<64x1xi1> to vector<64x32xi1>
    %27 = vector.broadcast %cst : f32 to vector<64x32xf32>
    %28 = arith.select %26, %27, %24 : vector<64x32xi1>, vector<64x32xf32>
    %c15_i32 = arith.constant 15 : i32
    %29 = vector.broadcast %c15_i32 : i32 to vector<64x1xi32>
    %30 = arith.cmpi eq, %21, %29 : vector<64x1xi32>
    %c63_i32 = arith.constant 63 : i32
    %31 = tpu.dynamic_rotate %4 by %c63_i32 dim 0 : vector<64x32xf32>, i32 -> vector<64x32xf32>
    %cst_10 = arith.constant 0.000000e+00 : f32
    %32 = vector.shape_cast %30 : vector<64x1xi1> to vector<64x1xi1>
    %33 = vector.broadcast %32 : vector<64x1xi1> to vector<64x32xi1>
    %34 = vector.broadcast %cst_10 : f32 to vector<64x32xf32>
    %35 = arith.select %33, %34, %31 : vector<64x32xi1>, vector<64x32xf32>
    %36 = arith.truncf %28 : vector<64x32xf32> to vector<64x32xbf16>
    %c16 = arith.constant 16 : index
    %c0_11 = arith.constant 0 : index
    %37 = vector.load %arg11[%c16, %c0_11] : memref<96x96xbf16, #tpu.memory_space<vmem>>, vector<64x32xbf16>
    tpu.vector_store %arg11[%c16, %c0_11], %36 {strides = array<i32>} : memref<96x96xbf16, #tpu.memory_space<vmem>>, vector<64x32xbf16>,
    %38 = arith.truncf %4 : vector<64x32xf32> to vector<64x32xbf16>
    %c16_12 = arith.constant 16 : index
    %c32 = arith.constant 32 : index
    %39 = vector.load %arg11[%c16_12, %c32] : memref<96x96xbf16, #tpu.memory_space<vmem>>, vector<64x32xbf16>
    tpu.vector_store %arg11[%c16_12, %c32], %38 {strides = array<i32>} : memref<96x96xbf16, #tpu.memory_space<vmem>>, vector<64x32xbf16>,
    %40 = arith.truncf %35 : vector<64x32xf32> to vector<64x32xbf16>
    %c16_13 = arith.constant 16 : index
    %c64 = arith.constant 64 : index
    %41 = vector.load %arg11[%c16_13, %c64] : memref<96x96xbf16, #tpu.memory_space<vmem>>, vector<64x32xbf16>
    tpu.vector_store %arg11[%c16_13, %c64], %40 {strides = array<i32>} : memref<96x96xbf16, #tpu.memory_space<vmem>>, vector<64x32xbf16>,
    %c0_14 = arith.constant 0 : index
    %c0_15 = arith.constant 0 : index
    %c0_16 = arith.constant 0 : index
    %42 = vector.load %arg4[%c0_14, %c0_15, %c0_16] : memref<1x16x32xf32, #tpu.memory_space<vmem>>, vector<1x16x32xf32>
    %43 = vector.shape_cast %42 : vector<1x16x32xf32> to vector<16x32xf32>
    %c0_17 = arith.constant 0 : index
    %c0_18 = arith.constant 0 : index
    %c0_19 = arith.constant 0 : index
    %44 = vector.load %arg5[%c0_17, %c0_18, %c0_19] : memref<1x16x32xf32, #tpu.memory_space<vmem>>, vector<1x16x32xf32>
    %45 = vector.shape_cast %44 : vector<1x16x32xf32> to vector<16x32xf32>
    %c0_20 = arith.constant 0 : index
    %c0_21 = arith.constant 0 : index
    %c0_22 = arith.constant 0 : index
    %46 = vector.load %arg6[%c0_20, %c0_21, %c0_22] : memref<1x16x32xf32, #tpu.memory_space<vmem>>, vector<1x16x32xf32>
    %47 = vector.shape_cast %46 : vector<1x16x32xf32> to vector<16x32xf32>
    %48 = arith.addf %43, %47 : vector<16x32xf32>
    %c0_23 = arith.constant 0 : index
    %c0_24 = arith.constant 0 : index
    %c0_25 = arith.constant 0 : index
    %49 = vector.load %arg7[%c0_23, %c0_24, %c0_25] : memref<1x16x32xf32, #tpu.memory_space<vmem>>, vector<1x16x32xf32>
    %50 = vector.shape_cast %49 : vector<1x16x32xf32> to vector<16x32xf32>
    %51 = arith.addf %45, %50 : vector<16x32xf32>
    %c0_i32_26 = arith.constant 0 : i32
    %52 = arith.cmpi sgt, %arg1, %c0_i32_26 : i32
    %53 = arith.extui %52 : i1 to i32
    %54 = arith.sitofp %53 : i32 to f32
    %55 = vector.broadcast %54 : f32 to vector<16x32xf32>
    %56 = arith.mulf %48, %55 : vector<16x32xf32>
    %c3_i32 = arith.constant 3 : i32
    %57 = arith.cmpi slt, %arg1, %c3_i32 : i32
    %58 = arith.extui %57 : i1 to i32
    %59 = arith.sitofp %58 : i32 to f32
    %60 = vector.broadcast %59 : f32 to vector<16x32xf32>
    %61 = arith.mulf %51, %60 : vector<16x32xf32>
    %62 = tpu.iota {dimensions = array<i32: 0>} : vector<16x1xi32>
    %c16_i32_27 = arith.constant 16 : i32
    %c0_i32_28 = arith.constant 0 : i32
    %63 = arith.cmpi eq, %c16_i32_27, %c0_i32_28 : i32
    %c1_i32_29 = arith.constant 1 : i32
    %64 = arith.select %63, %c1_i32_29, %c16_i32_27 : i32
    %65 = vector.broadcast %64 : i32 to vector<16x1xi32>
    %66 = arith.remsi %62, %65 : vector<16x1xi32>
    %c0_i32_30 = arith.constant 0 : i32
    %67 = vector.broadcast %c0_i32_30 : i32 to vector<16x1xi32>
    %68 = arith.cmpi ne, %66, %67 : vector<16x1xi32>
    %c0_i32_31 = arith.constant 0 : i32
    %69 = vector.broadcast %c0_i32_31 : i32 to vector<16x1xi32>
    %70 = arith.cmpi slt, %66, %69 : vector<16x1xi32>
    %c0_i32_32 = arith.constant 0 : i32
    %71 = arith.cmpi slt, %64, %c0_i32_32 : i32
    %72 = vector.broadcast %71 : i1 to vector<16x1xi1>
    %73 = vector.broadcast %72 : vector<16x1xi1> to vector<16x1xi1>
    %74 = arith.xori %70, %73 : vector<16x1xi1>
    %75 = arith.andi %74, %68 : vector<16x1xi1>
    %76 = vector.broadcast %64 : i32 to vector<16x1xi32>
    %77 = arith.addi %66, %76 : vector<16x1xi32>
    %78 = arith.select %75, %77, %66 : vector<16x1xi1>, vector<16x1xi32>
    %c0_i32_33 = arith.constant 0 : i32
    %79 = vector.broadcast %c0_i32_33 : i32 to vector<16x1xi32>
    %80 = arith.cmpi eq, %78, %79 : vector<16x1xi32>
    %c1_i32_34 = arith.constant 1 : i32
    %81 = tpu.dynamic_rotate %56 by %c1_i32_34 dim 0 : vector<16x32xf32>, i32 -> vector<16x32xf32>
    %cst_35 = arith.constant 0.000000e+00 : f32
    %82 = vector.shape_cast %80 : vector<16x1xi1> to vector<16x1xi1>
    %83 = vector.broadcast %82 : vector<16x1xi1> to vector<16x32xi1>
    %84 = vector.broadcast %cst_35 : f32 to vector<16x32xf32>
    %85 = arith.select %83, %84, %81 : vector<16x32xi1>, vector<16x32xf32>
    %c15_i32_36 = arith.constant 15 : i32
    %86 = vector.broadcast %c15_i32_36 : i32 to vector<16x1xi32>
    %87 = arith.cmpi eq, %78, %86 : vector<16x1xi32>
    %c15_i32_37 = arith.constant 15 : i32
    %88 = tpu.dynamic_rotate %56 by %c15_i32_37 dim 0 : vector<16x32xf32>, i32 -> vector<16x32xf32>
    %cst_38 = arith.constant 0.000000e+00 : f32
    %89 = vector.shape_cast %87 : vector<16x1xi1> to vector<16x1xi1>
    %90 = vector.broadcast %89 : vector<16x1xi1> to vector<16x32xi1>
    %91 = vector.broadcast %cst_38 : f32 to vector<16x32xf32>
    %92 = arith.select %90, %91, %88 : vector<16x32xi1>, vector<16x32xf32>
    %93 = arith.truncf %85 : vector<16x32xf32> to vector<16x32xbf16>
    %c0_39 = arith.constant 0 : index
    %c0_40 = arith.constant 0 : index
    %94 = vector.load %arg11[%c0_39, %c0_40] : memref<96x96xbf16, #tpu.memory_space<vmem>>, vector<16x32xbf16>
    tpu.vector_store %arg11[%c0_39, %c0_40], %93 {strides = array<i32>} : memref<96x96xbf16, #tpu.memory_space<vmem>>, vector<16x32xbf16>,
    %95 = arith.truncf %56 : vector<16x32xf32> to vector<16x32xbf16>
    %c0_41 = arith.constant 0 : index
    %c32_42 = arith.constant 32 : index
    %96 = vector.load %arg11[%c0_41, %c32_42] : memref<96x96xbf16, #tpu.memory_space<vmem>>, vector<16x32xbf16>
    tpu.vector_store %arg11[%c0_41, %c32_42], %95 {strides = array<i32>} : memref<96x96xbf16, #tpu.memory_space<vmem>>, vector<16x32xbf16>,
    %97 = arith.truncf %92 : vector<16x32xf32> to vector<16x32xbf16>
    %c0_43 = arith.constant 0 : index
    %c64_44 = arith.constant 64 : index
    %98 = vector.load %arg11[%c0_43, %c64_44] : memref<96x96xbf16, #tpu.memory_space<vmem>>, vector<16x32xbf16>
    tpu.vector_store %arg11[%c0_43, %c64_44], %97 {strides = array<i32>} : memref<96x96xbf16, #tpu.memory_space<vmem>>, vector<16x32xbf16>,
    %99 = tpu.iota {dimensions = array<i32: 0>} : vector<16x1xi32>
    %c16_i32_45 = arith.constant 16 : i32
    %c0_i32_46 = arith.constant 0 : i32
    %100 = arith.cmpi eq, %c16_i32_45, %c0_i32_46 : i32
    %c1_i32_47 = arith.constant 1 : i32
    %101 = arith.select %100, %c1_i32_47, %c16_i32_45 : i32
    %102 = vector.broadcast %101 : i32 to vector<16x1xi32>
    %103 = arith.remsi %99, %102 : vector<16x1xi32>
    %c0_i32_48 = arith.constant 0 : i32
    %104 = vector.broadcast %c0_i32_48 : i32 to vector<16x1xi32>
    %105 = arith.cmpi ne, %103, %104 : vector<16x1xi32>
    %c0_i32_49 = arith.constant 0 : i32
    %106 = vector.broadcast %c0_i32_49 : i32 to vector<16x1xi32>
    %107 = arith.cmpi slt, %103, %106 : vector<16x1xi32>
    %c0_i32_50 = arith.constant 0 : i32
    %108 = arith.cmpi slt, %101, %c0_i32_50 : i32
    %109 = vector.broadcast %108 : i1 to vector<16x1xi1>
    %110 = vector.broadcast %109 : vector<16x1xi1> to vector<16x1xi1>
    %111 = arith.xori %107, %110 : vector<16x1xi1>
    %112 = arith.andi %111, %105 : vector<16x1xi1>
    %113 = vector.broadcast %101 : i32 to vector<16x1xi32>
    %114 = arith.addi %103, %113 : vector<16x1xi32>
    %115 = arith.select %112, %114, %103 : vector<16x1xi1>, vector<16x1xi32>
    %c0_i32_51 = arith.constant 0 : i32
    %116 = vector.broadcast %c0_i32_51 : i32 to vector<16x1xi32>
    %117 = arith.cmpi eq, %115, %116 : vector<16x1xi32>
    %c1_i32_52 = arith.constant 1 : i32
    %118 = tpu.dynamic_rotate %61 by %c1_i32_52 dim 0 : vector<16x32xf32>, i32 -> vector<16x32xf32>
    %cst_53 = arith.constant 0.000000e+00 : f32
    %119 = vector.shape_cast %117 : vector<16x1xi1> to vector<16x1xi1>
    %120 = vector.broadcast %119 : vector<16x1xi1> to vector<16x32xi1>
    %121 = vector.broadcast %cst_53 : f32 to vector<16x32xf32>
    %122 = arith.select %120, %121, %118 : vector<16x32xi1>, vector<16x32xf32>
    %c15_i32_54 = arith.constant 15 : i32
    %123 = vector.broadcast %c15_i32_54 : i32 to vector<16x1xi32>
    %124 = arith.cmpi eq, %115, %123 : vector<16x1xi32>
    %c15_i32_55 = arith.constant 15 : i32
    %125 = tpu.dynamic_rotate %61 by %c15_i32_55 dim 0 : vector<16x32xf32>, i32 -> vector<16x32xf32>
    %cst_56 = arith.constant 0.000000e+00 : f32
    %126 = vector.shape_cast %124 : vector<16x1xi1> to vector<16x1xi1>
    %127 = vector.broadcast %126 : vector<16x1xi1> to vector<16x32xi1>
    %128 = vector.broadcast %cst_56 : f32 to vector<16x32xf32>
    %129 = arith.select %127, %128, %125 : vector<16x32xi1>, vector<16x32xf32>
    %130 = arith.truncf %122 : vector<16x32xf32> to vector<16x32xbf16>
    %c80 = arith.constant 80 : index
    %c0_57 = arith.constant 0 : index
    %131 = vector.load %arg11[%c80, %c0_57] : memref<96x96xbf16, #tpu.memory_space<vmem>>, vector<16x32xbf16>
    tpu.vector_store %arg11[%c80, %c0_57], %130 {strides = array<i32>} : memref<96x96xbf16, #tpu.memory_space<vmem>>, vector<16x32xbf16>,
    %132 = arith.truncf %61 : vector<16x32xf32> to vector<16x32xbf16>
    %c80_58 = arith.constant 80 : index
    %c32_59 = arith.constant 32 : index
    %133 = vector.load %arg11[%c80_58, %c32_59] : memref<96x96xbf16, #tpu.memory_space<vmem>>, vector<16x32xbf16>
    tpu.vector_store %arg11[%c80_58, %c32_59], %132 {strides = array<i32>} : memref<96x96xbf16, #tpu.memory_space<vmem>>, vector<16x32xbf16>,
    %134 = arith.truncf %129 : vector<16x32xf32> to vector<16x32xbf16>
    %c80_60 = arith.constant 80 : index
    %c64_61 = arith.constant 64 : index
    %135 = vector.load %arg11[%c80_60, %c64_61] : memref<96x96xbf16, #tpu.memory_space<vmem>>, vector<16x32xbf16>
    tpu.vector_store %arg11[%c80_60, %c64_61], %134 {strides = array<i32>} : memref<96x96xbf16, #tpu.memory_space<vmem>>, vector<16x32xbf16>,
    %cst_62 = arith.constant 0.000000e+00 : f32
    %136 = vector.broadcast %cst_62 : f32 to vector<64x32xf32>
    %c0_63 = arith.constant 0 : index
    %c0_64 = arith.constant 0 : index
    %137 = vector.load %arg11[%c0_63, %c0_64] : memref<96x96xbf16, #tpu.memory_space<vmem>>, vector<64x96xbf16>
    %c0_65 = arith.constant 0 : index
    %c0_66 = arith.constant 0 : index
    %c0_67 = arith.constant 0 : index
    %138 = vector.load %arg8[%c0_65, %c0_66, %c0_67] : memref<3x96x32xbf16, #tpu.memory_space<vmem>>, vector<1x96x32xbf16>
    %139 = vector.shape_cast %138 : vector<1x96x32xbf16> to vector<96x32xbf16>
    %cst_68 = arith.constant dense<0.000000e+00> : vector<64x32xf32>
    %140 = tpu.matmul %137, %139, %cst_68 {dimension_numbers = #tpu.dot_dimension_numbers<[1], [0], [0], [1], [0, 0, 1, 1], [], []>} : vector<64x96xbf16>, vector<96x32xbf16>, vector<64x32xf32> -> vector<64x32xf32>
    %141 = arith.addf %136, %140 : vector<64x32xf32>
    %c16_69 = arith.constant 16 : index
    %c0_70 = arith.constant 0 : index
    %142 = vector.load %arg11[%c16_69, %c0_70] : memref<96x96xbf16, #tpu.memory_space<vmem>>, vector<64x96xbf16>
    %c1 = arith.constant 1 : index
    %c0_71 = arith.constant 0 : index
    %c0_72 = arith.constant 0 : index
    %143 = vector.load %arg8[%c1, %c0_71, %c0_72] : memref<3x96x32xbf16, #tpu.memory_space<vmem>>, vector<1x96x32xbf16>
    %144 = vector.shape_cast %143 : vector<1x96x32xbf16> to vector<96x32xbf16>
    %cst_73 = arith.constant dense<0.000000e+00> : vector<64x32xf32>
    %145 = tpu.matmul %142, %144, %cst_73 {dimension_numbers = #tpu.dot_dimension_numbers<[1], [0], [0], [1], [0, 0, 1, 1], [], []>} : vector<64x96xbf16>, vector<96x32xbf16>, vector<64x32xf32> -> vector<64x32xf32>
    %146 = arith.addf %141, %145 : vector<64x32xf32>
    %c32_74 = arith.constant 32 : index
    %c0_75 = arith.constant 0 : index
    %147 = vector.load %arg11[%c32_74, %c0_75] : memref<96x96xbf16, #tpu.memory_space<vmem>>, vector<64x96xbf16>
    %c2 = arith.constant 2 : index
    %c0_76 = arith.constant 0 : index
    %c0_77 = arith.constant 0 : index
    %148 = vector.load %arg8[%c2, %c0_76, %c0_77] : memref<3x96x32xbf16, #tpu.memory_space<vmem>>, vector<1x96x32xbf16>
    %149 = vector.shape_cast %148 : vector<1x96x32xbf16> to vector<96x32xbf16>
    %cst_78 = arith.constant dense<0.000000e+00> : vector<64x32xf32>
    %150 = tpu.matmul %147, %149, %cst_78 {dimension_numbers = #tpu.dot_dimension_numbers<[1], [0], [0], [1], [0, 0, 1, 1], [], []>} : vector<64x96xbf16>, vector<96x32xbf16>, vector<64x32xf32> -> vector<64x32xf32>
    %151 = arith.addf %146, %150 : vector<64x32xf32>
    %c0_79 = arith.constant 0 : index
    %c0_80 = arith.constant 0 : index
    %152 = vector.load %arg9[%c0_79, %c0_80] : memref<1x32xf32, #tpu.memory_space<vmem>>, vector<1x32xf32>
    %153 = vector.broadcast %152 : vector<1x32xf32> to vector<64x32xf32>
    %154 = arith.addf %151, %153 : vector<64x32xf32>
    %c0_81 = arith.constant 0 : index
    %c0_82 = arith.constant 0 : index
    %c0_83 = arith.constant 0 : index
    %155 = vector.load %arg10[%c0_81, %c0_82, %c0_83] : memref<1x64x32xf32, #tpu.memory_space<vmem>>, vector<1x64x32xf32>
    %156 = vector.shape_cast %155 : vector<1x64x32xf32> to vector<64x32xf32>
    %157 = vector.shape_cast %154 : vector<64x32xf32> to vector<1x64x32xf32>
    tpu.vector_store %arg10[%c0_81, %c0_82, %c0_83], %157 {strides = array<i32>} : memref<1x64x32xf32, #tpu.memory_space<vmem>>, vector<1x64x32xf32>,
    return
  }
  func.func @transform_0(%arg0: i32, %arg1: i32) -> (i32, i32, i32) {
    %c0_i32 = arith.constant 0 : i32
    %c0_i32_0 = arith.constant 0 : i32
    return %arg0, %arg1, %c0_i32 : i32, i32, i32
  }
  func.func @transform_1(%arg0: i32, %arg1: i32) -> (i32, i32, i32) {
    %c0_i32 = arith.constant 0 : i32
    %c0_i32_0 = arith.constant 0 : i32
    return %arg0, %arg1, %c0_i32 : i32, i32, i32
  }
  func.func @transform_2(%arg0: i32, %arg1: i32) -> (i32, i32, i32) {
    %c4_i32 = arith.constant 4 : i32
    %0 = arith.muli %arg1, %c4_i32 : i32
    %c1_i32 = arith.constant 1 : i32
    %1 = arith.subi %0, %c1_i32 : i32
    %c0_i32 = arith.constant 0 : i32
    %2 = arith.maxsi %1, %c0_i32 : i32
    %c0_i32_0 = arith.constant 0 : i32
    %c0_i32_1 = arith.constant 0 : i32
    return %arg0, %2, %c0_i32_0 : i32, i32, i32
  }
  func.func @transform_3(%arg0: i32, %arg1: i32) -> (i32, i32, i32) {
    %c4_i32 = arith.constant 4 : i32
    %0 = arith.muli %arg1, %c4_i32 : i32
    %c4_i32_0 = arith.constant 4 : i32
    %1 = arith.addi %0, %c4_i32_0 : i32
    %c15_i32 = arith.constant 15 : i32
    %2 = arith.minsi %1, %c15_i32 : i32
    %c0_i32 = arith.constant 0 : i32
    %c0_i32_1 = arith.constant 0 : i32
    return %arg0, %2, %c0_i32 : i32, i32, i32
  }
  func.func @transform_4(%arg0: i32, %arg1: i32) -> (i32, i32, i32) {
    %c4_i32 = arith.constant 4 : i32
    %0 = arith.muli %arg1, %c4_i32 : i32
    %c1_i32 = arith.constant 1 : i32
    %1 = arith.subi %0, %c1_i32 : i32
    %c0_i32 = arith.constant 0 : i32
    %2 = arith.maxsi %1, %c0_i32 : i32
    %c0_i32_0 = arith.constant 0 : i32
    %c0_i32_1 = arith.constant 0 : i32
    return %arg0, %2, %c0_i32_0 : i32, i32, i32
  }
  func.func @transform_5(%arg0: i32, %arg1: i32) -> (i32, i32, i32) {
    %c4_i32 = arith.constant 4 : i32
    %0 = arith.muli %arg1, %c4_i32 : i32
    %c4_i32_0 = arith.constant 4 : i32
    %1 = arith.addi %0, %c4_i32_0 : i32
    %c15_i32 = arith.constant 15 : i32
    %2 = arith.minsi %1, %c15_i32 : i32
    %c0_i32 = arith.constant 0 : i32
    %c0_i32_1 = arith.constant 0 : i32
    return %arg0, %2, %c0_i32 : i32, i32, i32
  }
  func.func @transform_6(%arg0: i32, %arg1: i32) -> (i32, i32, i32) {
    %c0_i32 = arith.constant 0 : i32
    %c0_i32_0 = arith.constant 0 : i32
    %c0_i32_1 = arith.constant 0 : i32
    %c0_i32_2 = arith.constant 0 : i32
    return %c0_i32, %c0_i32_0, %c0_i32_1 : i32, i32, i32
  }
  func.func @transform_7(%arg0: i32, %arg1: i32) -> (i32, i32) {
    %c0_i32 = arith.constant 0 : i32
    %c0_i32_0 = arith.constant 0 : i32
    %c0_i32_1 = arith.constant 0 : i32
    return %c0_i32, %c0_i32_0 : i32, i32
  }
  func.func @transform_8(%arg0: i32, %arg1: i32) -> (i32, i32, i32) {
    %c0_i32 = arith.constant 0 : i32
    %c0_i32_0 = arith.constant 0 : i32
    return %arg0, %arg1, %c0_i32 : i32, i32, i32
  }
}

</mosaic_0001>

<llo_original>
// kernel: tpu_custom_call.1
$region0: #{tpu_custom_call.1}
  #allocation0 [shape = 'u32[]', space=smem, size = 0x4, offset = 0x4, fixed_abs, tag = 'smem constant byte address 0x4 - core index']
  #allocation1 [shape = 'u32[144,128]{1,0:T(1,128)}', space=vmem, size = 0x12000, scoped, tag = 'internal scratch']
  #allocation2 [shape = 'bf16[96,96]{1,0:T(8,128)(2,1)}', space=vmem, size = 0x6000, scoped, tag = 'scratch operand']
  %s0 = inlined_call_operand.vmem [shape: f32[2,256,32], index: 0, kind: input, shape index: {}]
  %s1 = inlined_call_operand.vmem [shape: f32[2,256,32], index: 1, kind: input, shape index: {}]
  %s2 = inlined_call_operand.vmem [shape: f32[2,256,32], index: 2, kind: input, shape index: {}]
  %s3 = inlined_call_operand.vmem [shape: f32[2,256,32], index: 3, kind: input, shape index: {}]
  %s4 = inlined_call_operand.vmem [shape: f32[2,256,32], index: 4, kind: input, shape index: {}]
  %s5 = inlined_call_operand.vmem [shape: f32[2,256,32], index: 5, kind: input, shape index: {}]
  %s6 = inlined_call_operand.vmem [shape: bf16[3,96,32], index: 6, kind: input, shape index: {}]
  %s7 = inlined_call_operand.vmem [shape: f32[1,32], index: 7, kind: input, shape index: {}]
  %s8 = inlined_call_operand.vmem [shape: f32[2,256,32], index: 8, kind: output, shape index: {}]
  %s9 = sld [smem:[#allocation0]]
  $region65: #{tpu_custom_call.1} parent=0
    _
  %s11 = ssub.s32 1, %s9
  %s12 = scalar_select 0, %s11, %s9
  loop: start=0, step=1, limit=10
  $region2: #{tpu_custom_call.1} parent=0 // loop_pre_header
    _
  $region3: #{tpu_custom_call.1} parent=0 // loop_header
    %s14 = sphi 0, %s18
    %p15 = scmp.ge.s32.totalorder %s14, 10
    %s21 = sphi 0, %s33
    %s22 = sphi 0, %s29
    %s23 = sphi 0, %s21
    %s24 = sphi 0, %s22
    %s25 = sphi 0, %s23
    %s26 = sphi 0, %s24
    %s38 = sphi 0, %s40
    %s41 = sphi 0, %s38
    %s42 = sphi 0, %s41
    %s58 = sphi 0, %s42
    %s66 = sphi 0, %s68
    %s69 = sphi 0, %s66
    %s70 = sphi 0, %s69
    %s86 = sphi 0, %s70
    %s102 = sphi 0, %s104
    %s105 = sphi 0, %s102
    %s106 = sphi 0, %s105
    %s122 = sphi 0, %s106
    %s138 = sphi 0, %s140
    %s141 = sphi 0, %s138
    %s142 = sphi 0, %s141
    %s158 = sphi 0, %s142
    %s174 = sphi 0, %s176
    %s177 = sphi 0, %s174
    %s178 = sphi 0, %s177
    %s194 = sphi 0, %s178
    %s210 = sphi 0, %s212
    %s213 = sphi 0, %s210
    %s214 = sphi 0, %s213
    %s230 = sphi 0, %s214
    %s234 = sphi 0, %s234
    %s236 = sphi 0, %s234
    %s237 = sphi 0, %s236
    %s251 = sphi 0, %s237
    %s255 = sphi 0, %s255
    %s257 = sphi 0, %s255
    %s258 = sphi 0, %s257
    %s272 = sphi 0, %s258
    %s280 = sphi 0, %s282
    %s283 = sphi 0, %s280
    %s284 = sphi 0, %s283
    %s300 = sphi 0, %s284
  $region4: #{tpu_custom_call.1} parent=0 // loop_header_branch
    %17 = sbr.rel (%p15) target = $region8
  $region5: #{tpu_custom_call.1} parent=0 // loop_body
    %s19 = ssub.s32 %s14, 1
    %s20 = ssub.s32 %s14, 2
    %s27 = sadd.s32 1, %s22
    %p28 = scmp.ge.s32.totalorder %s27, 4
    %s29 = scalar_select %p28, 0, %s27
    %s30 = sadd.s32 1, %s21
    %s31 = scalar_select %p28, %s30, %s21
    %p32 = scmp.ge.s32.totalorder %s31, 2
    %s33 = scalar_select %p32, 0, %s31
    %s34 = ssub.s32 %s21, %s33
    %s35 = ssub.s32 %s22, %s29
    %s36 = sor.u32 %s34, %s35
    %p37 = scmp.eq.s32.totalorder %s36, 0
    %s39 = sadd.s32 %s38, 1
    %s40 = scalar_select %p37, %s38, %s39
    %p43 = pneg %p37
    %p44 = scmp.eq.s32.totalorder %s14, 7
    %p45 = por %p43, %p44
    %p46 = scmp.ne.s32.totalorder %s38, %s41
    %p47 = scmp.eq.s32.totalorder %s14, 0
    %p48 = por %p46, %p47
    %p49 = scmp.ne.s32.totalorder %s38, %s41
    %p50 = scmp.eq.s32.totalorder %s19, 7
    %p51 = por %p49, %p50
    %p52 = scmp.ne.s32.totalorder %s41, %s42
    %p53 = scmp.eq.s32.totalorder %s19, 0
    %p54 = por %p52, %p53
    %p55 = scmp.ne.s32.totalorder %s41, %s42
    %p56 = scmp.eq.s32.totalorder %s20, 7
    %p57 = por %p55, %p56
    %p59 = scmp.ne.s32.totalorder %s42, %s58
    %p60 = scmp.eq.s32.totalorder %s20, 0
    %p61 = por %p59, %p60
    %s62 = ssub.s32 %s21, %s33
    %s63 = ssub.s32 %s22, %s29
    %s64 = sor.u32 %s62, %s63
    %p65 = scmp.eq.s32.totalorder %s64, 0
    %s67 = sadd.s32 %s66, 1
    %s68 = scalar_select %p65, %s66, %s67
    %p71 = pneg %p65
    %p72 = scmp.eq.s32.totalorder %s14, 7
    %p73 = por %p71, %p72
    %p74 = scmp.ne.s32.totalorder %s66, %s69
    %p75 = scmp.eq.s32.totalorder %s14, 0
    %p76 = por %p74, %p75
    %p77 = scmp.ne.s32.totalorder %s66, %s69
    %p78 = scmp.eq.s32.totalorder %s19, 7
    %p79 = por %p77, %p78
    %p80 = scmp.ne.s32.totalorder %s69, %s70
    %p81 = scmp.eq.s32.totalorder %s19, 0
    %p82 = por %p80, %p81
    %p83 = scmp.ne.s32.totalorder %s69, %s70
    %p84 = scmp.eq.s32.totalorder %s20, 7
    %p85 = por %p83, %p84
    %p87 = scmp.ne.s32.totalorder %s70, %s86
    %p88 = scmp.eq.s32.totalorder %s20, 0
    %p89 = por %p87, %p88
    %s90 = smul.u32 %s22, 4
    %s91 = ssub.s32 %s90, 1
    %p92 = scmp.gt.s32.totalorder %s91, 0
    %s93 = scalar_select %p92, %s91, 0
    %s94 = smul.u32 %s29, 4
    %s95 = ssub.s32 %s94, 1
    %p96 = scmp.gt.s32.totalorder %s95, 0
    %s97 = scalar_select %p96, %s95, 0
    %s98 = ssub.s32 %s21, %s33
    %s99 = ssub.s32 %s93, %s97
    %s100 = sor.u32 %s98, %s99
    %p101 = scmp.eq.s32.totalorder %s100, 0
    %s103 = sadd.s32 %s102, 1
    %s104 = scalar_select %p101, %s102, %s103
    %p107 = pneg %p101
    %p108 = scmp.eq.s32.totalorder %s14, 7
    %p109 = por %p107, %p108
    %p110 = scmp.ne.s32.totalorder %s102, %s105
    %p111 = scmp.eq.s32.totalorder %s14, 0
    %p112 = por %p110, %p111
    %p113 = scmp.ne.s32.totalorder %s102, %s105
    %p114 = scmp.eq.s32.totalorder %s19, 7
    %p115 = por %p113, %p114
    %p116 = scmp.ne.s32.totalorder %s105, %s106
    %p117 = scmp.eq.s32.totalorder %s19, 0
    %p118 = por %p116, %p117
    %p119 = scmp.ne.s32.totalorder %s105, %s106
    %p120 = scmp.eq.s32.totalorder %s20, 7
    %p121 = por %p119, %p120
    %p123 = scmp.ne.s32.totalorder %s106, %s122
    %p124 = scmp.eq.s32.totalorder %s20, 0
    %p125 = por %p123, %p124
    %s126 = smul.u32 %s22, 4
    %s127 = sadd.s32 %s126, 4
    %p128 = scmp.lt.s32.totalorder %s127, 15
    %s129 = scalar_select %p128, %s127, 15
    %s130 = smul.u32 %s29, 4
    %s131 = sadd.s32 %s130, 4
    %p132 = scmp.lt.s32.totalorder %s131, 15
    %s133 = scalar_select %p132, %s131, 15
    %s134 = ssub.s32 %s21, %s33
    %s135 = ssub.s32 %s129, %s133
    %s136 = sor.u32 %s134, %s135
    %p137 = scmp.eq.s32.totalorder %s136, 0
    %s139 = sadd.s32 %s138, 1
    %s140 = scalar_select %p137, %s138, %s139
    %p143 = pneg %p137
    %p144 = scmp.eq.s32.totalorder %s14, 7
    %p145 = por %p143, %p144
    %p146 = scmp.ne.s32.totalorder %s138, %s141
    %p147 = scmp.eq.s32.totalorder %s14, 0
    %p148 = por %p146, %p147
    %p149 = scmp.ne.s32.totalorder %s138, %s141
    %p150 = scmp.eq.s32.totalorder %s19, 7
    %p151 = por %p149, %p150
    %p152 = scmp.ne.s32.totalorder %s141, %s142
    %p153 = scmp.eq.s32.totalorder %s19, 0
    %p154 = por %p152, %p153
    %p155 = scmp.ne.s32.totalorder %s141, %s142
    %p156 = scmp.eq.s32.totalorder %s20, 7
    %p157 = por %p155, %p156
    %p159 = scmp.ne.s32.totalorder %s142, %s158
    %p160 = scmp.eq.s32.totalorder %s20, 0
    %p161 = por %p159, %p160
    %s162 = smul.u32 %s22, 4
    %s163 = ssub.s32 %s162, 1
    %p164 = scmp.gt.s32.totalorder %s163, 0
    %s165 = scalar_select %p164, %s163, 0
    %s166 = smul.u32 %s29, 4
    %s167 = ssub.s32 %s166, 1
    %p168 = scmp.gt.s32.totalorder %s167, 0
    %s169 = scalar_select %p168, %s167, 0
    %s170 = ssub.s32 %s21, %s33
    %s171 = ssub.s32 %s165, %s169
    %s172 = sor.u32 %s170, %s171
    %p173 = scmp.eq.s32.totalorder %s172, 0
    %s175 = sadd.s32 %s174, 1
    %s176 = scalar_select %p173, %s174, %s175
    %p179 = pneg %p173
    %p180 = scmp.eq.s32.totalorder %s14, 7
    %p181 = por %p179, %p180
    %p182 = scmp.ne.s32.totalorder %s174, %s177
    %p183 = scmp.eq.s32.totalorder %s14, 0
    %p184 = por %p182, %p183
    %p185 = scmp.ne.s32.totalorder %s174, %s177
    %p186 = scmp.eq.s32.totalorder %s19, 7
    %p187 = por %p185, %p186
    %p188 = scmp.ne.s32.totalorder %s177, %s178
    %p189 = scmp.eq.s32.totalorder %s19, 0
    %p190 = por %p188, %p189
    %p191 = scmp.ne.s32.totalorder %s177, %s178
    %p192 = scmp.eq.s32.totalorder %s20, 7
    %p193 = por %p191, %p192
    %p195 = scmp.ne.s32.totalorder %s178, %s194
    %p196 = scmp.eq.s32.totalorder %s20, 0
    %p197 = por %p195, %p196
    %s198 = smul.u32 %s22, 4
    %s199 = sadd.s32 %s198, 4
    %p200 = scmp.lt.s32.totalorder %s199, 15
    %s201 = scalar_select %p200, %s199, 15
    %s202 = smul.u32 %s29, 4
    %s203 = sadd.s32 %s202, 4
    %p204 = scmp.lt.s32.totalorder %s203, 15
    %s205 = scalar_select %p204, %s203, 15
    %s206 = ssub.s32 %s21, %s33
    %s207 = ssub.s32 %s201, %s205
    %s208 = sor.u32 %s206, %s207
    %p209 = scmp.eq.s32.totalorder %s208, 0
    %s211 = sadd.s32 %s210, 1
    %s212 = scalar_select %p209, %s210, %s211
    %p215 = pneg %p209
    %p216 = scmp.eq.s32.totalorder %s14, 7
    %p217 = por %p215, %p216
    %p218 = scmp.ne.s32.totalorder %s210, %s213
    %p219 = scmp.eq.s32.totalorder %s14, 0
    %p220 = por %p218, %p219
    %p221 = scmp.ne.s32.totalorder %s210, %s213
    %p222 = scmp.eq.s32.totalorder %s19, 7
    %p223 = por %p221, %p222
    %p224 = scmp.ne.s32.totalorder %s213, %s214
    %p225 = scmp.eq.s32.totalorder %s19, 0
    %p226 = por %p224, %p225
    %p227 = scmp.ne.s32.totalorder %s213, %s214
    %p228 = scmp.eq.s32.totalorder %s20, 7
    %p229 = por %p227, %p228
    %p231 = scmp.ne.s32.totalorder %s214, %s230
    %p232 = scmp.eq.s32.totalorder %s20, 0
    %p233 = por %p231, %p232
    %s235 = sadd.s32 %s234, 1
    %p238 = scmp.eq.s32.totalorder %s14, 7
    %p239 = scmp.ne.s32.totalorder %s234, %s236
    %p240 = scmp.eq.s32.totalorder %s14, 0
    %p241 = por %p239, %p240
    %p242 = scmp.ne.s32.totalorder %s234, %s236
    %p243 = scmp.eq.s32.totalorder %s19, 7
    %p244 = por %p242, %p243
    %p245 = scmp.ne.s32.totalorder %s236, %s237
    %p246 = scmp.eq.s32.totalorder %s19, 0
    %p247 = por %p245, %p246
    %p248 = scmp.ne.s32.totalorder %s236, %s237
    %p249 = scmp.eq.s32.totalorder %s20, 7
    %p250 = por %p248, %p249
    %p252 = scmp.ne.s32.totalorder %s237, %s251
    %p253 = scmp.eq.s32.totalorder %s20, 0
    %p254 = por %p252, %p253
    %s256 = sadd.s32 %s255, 1
    %p259 = scmp.eq.s32.totalorder %s14, 7
    %p260 = scmp.ne.s32.totalorder %s255, %s257
    %p261 = scmp.eq.s32.totalorder %s14, 0
    %p262 = por %p260, %p261
    %p263 = scmp.ne.s32.totalorder %s255, %s257
    %p264 = scmp.eq.s32.totalorder %s19, 7
    %p265 = por %p263, %p264
    %p266 = scmp.ne.s32.totalorder %s257, %s258
    %p267 = scmp.eq.s32.totalorder %s19, 0
    %p268 = por %p266, %p267
    %p269 = scmp.ne.s32.totalorder %s257, %s258
    %p270 = scmp.eq.s32.totalorder %s20, 7
    %p271 = por %p269, %p270
    %p273 = scmp.ne.s32.totalorder %s258, %s272
    %p274 = scmp.eq.s32.totalorder %s20, 0
    %p275 = por %p273, %p274
    %s276 = ssub.s32 %s21, %s33
    %s277 = ssub.s32 %s22, %s29
    %s278 = sor.u32 %s276, %s277
    %p279 = scmp.eq.s32.totalorder %s278, 0
    %s281 = sadd.s32 %s280, 1
    %s282 = scalar_select %p279, %s280, %s281
    %p285 = pneg %p279
    %p286 = scmp.eq.s32.totalorder %s14, 7
    %p287 = por %p285, %p286
    %p288 = scmp.ne.s32.totalorder %s280, %s283
    %p289 = scmp.eq.s32.totalorder %s14, 0
    %p290 = por %p288, %p289
    %p291 = scmp.ne.s32.totalorder %s280, %s283
    %p292 = scmp.eq.s32.totalorder %s19, 7
    %p293 = por %p291, %p292
    %p294 = scmp.ne.s32.totalorder %s283, %s284
    %p295 = scmp.eq.s32.totalorder %s19, 0
    %p296 = por %p294, %p295
    %p297 = scmp.ne.s32.totalorder %s283, %s284
    %p298 = scmp.eq.s32.totalorder %s20, 7
    %p299 = por %p297, %p298
    %p301 = scmp.ne.s32.totalorder %s284, %s300
    %p302 = scmp.eq.s32.totalorder %s20, 0
    %p303 = por %p301, %p302
    %p304 = scmp.le.s32.totalorder 1, %s14
    %p305 = scmp.lt.s32.totalorder %s14, 9
    %p306 = pnand %p304, %p305
    %p307 = pneg %p306
    // Predicated region
    $region9: #{tpu_custom_call.1} parent=5 // pred_check
      _
    $region10: #{tpu_custom_call.1} parent=5 // pred_check_branch
      %309 = sbr.rel (%p306) target = $region12
    $region11: #{tpu_custom_call.1} parent=5 // pred_region
      %s310 = ssub.s32 %s14, 1
      // Predicated region
      $region13: #{tpu_custom_call.1} parent=11 // pred_check
        %p311 = pneg %p247
      $region14: #{tpu_custom_call.1} parent=11 // pred_check_branch
        %313 = sbr.rel (%p311) target = $region16
      $region15: #{tpu_custom_call.1} parent=11 // pred_region
        _
      $region16: #{tpu_custom_call.1} parent=11 // pred_fallthru
        _
      // Predicated region
      $region17: #{tpu_custom_call.1} parent=11 // pred_check
        %p314 = pneg %p268
      $region18: #{tpu_custom_call.1} parent=11 // pred_check_branch
        %316 = sbr.rel (%p314) target = $region20
      $region19: #{tpu_custom_call.1} parent=11 // pred_region
        _
      $region20: #{tpu_custom_call.1} parent=11 // pred_fallthru
        _
    $region12: #{tpu_custom_call.1} parent=5 // pred_fallthru
      _
    %p317 = scmp.lt.s32.totalorder %s14, 8
    // Predicated region
    $region21: #{tpu_custom_call.1} parent=5 // pred_check
      %p318 = pneg %p317
    $region22: #{tpu_custom_call.1} parent=5 // pred_check_branch
      %320 = sbr.rel (%p318) target = $region24
    $region23: #{tpu_custom_call.1} parent=5 // pred_region
      // Predicated region
      $region25: #{tpu_custom_call.1} parent=23 // pred_check
        %p321 = pneg %p48
      $region26: #{tpu_custom_call.1} parent=23 // pred_check_branch
        %323 = sbr.rel (%p321) target = $region28
      $region27: #{tpu_custom_call.1} parent=23 // pred_region
        %s324 = smul.u32 8, %s22
        %p325 = scmp.lt.s32.totalorder %s21, 1
        %s326 = scalar_select %p325, %s21, 1
        %p327 = scmp.lt.s32.totalorder %s324, 31
        %s328 = scalar_select %p327, %s324, 31
        %s329 = smul.addr %s326, 32
        %s330 = sadd.s32 %s328, %s329
        %s331 = smul.addr %s330, 8
        %s332 = scalar_lea.vmem %s0, %s331
        %s333 = smul.u32 8, %s22
      $region28: #{tpu_custom_call.1} parent=23 // pred_fallthru
        _
      // Predicated region
      $region29: #{tpu_custom_call.1} parent=23 // pred_check
        %p334 = pneg %p76
      $region30: #{tpu_custom_call.1} parent=23 // pred_check_branch
        %336 = sbr.rel (%p334) target = $region32
      $region31: #{tpu_custom_call.1} parent=23 // pred_region
        %s337 = smul.u32 8, %s22
        %p338 = scmp.lt.s32.totalorder %s21, 1
        %s339 = scalar_select %p338, %s21, 1
        %p340 = scmp.lt.s32.totalorder %s337, 31
        %s341 = scalar_select %p340, %s337, 31
        %s342 = smul.addr %s339, 32
        %s343 = sadd.s32 %s341, %s342
        %s344 = smul.addr %s343, 8
        %s345 = scalar_lea.vmem %s1, %s344
        %s346 = smul.u32 8, %s22
      $region32: #{tpu_custom_call.1} parent=23 // pred_fallthru
        _
      // Predicated region
      $region33: #{tpu_custom_call.1} parent=23 // pred_check
        %p347 = pneg %p112
      $region34: #{tpu_custom_call.1} parent=23 // pred_check_branch
        %349 = sbr.rel (%p347) target = $region36
      $region35: #{tpu_custom_call.1} parent=23 // pred_region
        %s350 = smul.u32 %s22, 4
        %s351 = ssub.s32 %s350, 1
        %p352 = scmp.gt.s32.totalorder %s351, 0
        %s353 = scalar_select %p352, %s351, 0
        %s354 = smul.u32 2, %s353
        %p355 = scmp.lt.s32.totalorder %s21, 1
        %s356 = scalar_select %p355, %s21, 1
        %p357 = scmp.lt.s32.totalorder %s354, 31
        %s358 = scalar_select %p357, %s354, 31
        %s359 = smul.addr %s356, 32
        %s360 = sadd.s32 %s358, %s359
        %s361 = smul.addr %s360, 8
        %s362 = scalar_lea.vmem %s2, %s361
        %s363 = smul.u32 %s22, 4
        %s364 = ssub.s32 %s363, 1
        %p365 = scmp.gt.s32.totalorder %s364, 0
        %s366 = scalar_select %p365, %s364, 0
        %s367 = smul.u32 2, %s366
      $region36: #{tpu_custom_call.1} parent=23 // pred_fallthru
        _
      // Predicated region
      $region37: #{tpu_custom_call.1} parent=23 // pred_check
        %p368 = pneg %p148
      $region38: #{tpu_custom_call.1} parent=23 // pred_check_branch
        %370 = sbr.rel (%p368) target = $region40
      $region39: #{tpu_custom_call.1} parent=23 // pred_region
        %s371 = smul.u32 %s22, 4
        %s372 = sadd.s32 %s371, 4
        %p373 = scmp.lt.s32.totalorder %s372, 15
        %s374 = scalar_select %p373, %s372, 15
        %s375 = smul.u32 2, %s374
        %p376 = scmp.lt.s32.totalorder %s21, 1
        %s377 = scalar_select %p376, %s21, 1
        %p378 = scmp.lt.s32.totalorder %s375, 31
        %s379 = scalar_select %p378, %s375, 31
        %s380 = smul.addr %s377, 32
        %s381 = sadd.s32 %s379, %s380
        %s382 = smul.addr %s381, 8
        %s383 = scalar_lea.vmem %s3, %s382
        %s384 = smul.u32 %s22, 4
        %s385 = sadd.s32 %s384, 4
        %p386 = scmp.lt.s32.totalorder %s385, 15
        %s387 = scalar_select %p386, %s385, 15
        %s388 = smul.u32 2, %s387
      $region40: #{tpu_custom_call.1} parent=23 // pred_fallthru
        _
      // Predicated region
      $region41: #{tpu_custom_call.1} parent=23 // pred_check
        %p389 = pneg %p184
      $region42: #{tpu_custom_call.1} parent=23 // pred_check_branch
        %391 = sbr.rel (%p389) target = $region44
      $region43: #{tpu_custom_call.1} parent=23 // pred_region
        %s392 = smul.u32 %s22, 4
        %s393 = ssub.s32 %s392, 1
        %p394 = scmp.gt.s32.totalorder %s393, 0
        %s395 = scalar_select %p394, %s393, 0
        %s396 = smul.u32 2, %s395
        %p397 = scmp.lt.s32.totalorder %s21, 1
        %s398 = scalar_select %p397, %s21, 1
        %p399 = scmp.lt.s32.totalorder %s396, 31
        %s400 = scalar_select %p399, %s396, 31
        %s401 = smul.addr %s398, 32
        %s402 = sadd.s32 %s400, %s401
        %s403 = smul.addr %s402, 8
        %s404 = scalar_lea.vmem %s4, %s403
        %s405 = smul.u32 %s22, 4
        %s406 = ssub.s32 %s405, 1
        %p407 = scmp.gt.s32.totalorder %s406, 0
        %s408 = scalar_select %p407, %s406, 0
        %s409 = smul.u32 2, %s408
      $region44: #{tpu_custom_call.1} parent=23 // pred_fallthru
        _
      // Predicated region
      $region45: #{tpu_custom_call.1} parent=23 // pred_check
        %p410 = pneg %p220
      $region46: #{tpu_custom_call.1} parent=23 // pred_check_branch
        %412 = sbr.rel (%p410) target = $region48
      $region47: #{tpu_custom_call.1} parent=23 // pred_region
        %s413 = smul.u32 %s22, 4
        %s414 = sadd.s32 %s413, 4
        %p415 = scmp.lt.s32.totalorder %s414, 15
        %s416 = scalar_select %p415, %s414, 15
        %s417 = smul.u32 2, %s416
        %p418 = scmp.lt.s32.totalorder %s21, 1
        %s419 = scalar_select %p418, %s21, 1
        %p420 = scmp.lt.s32.totalorder %s417, 31
        %s421 = scalar_select %p420, %s417, 31
        %s422 = smul.addr %s419, 32
        %s423 = sadd.s32 %s421, %s422
        %s424 = smul.addr %s423, 8
        %s425 = scalar_lea.vmem %s5, %s424
        %s426 = smul.u32 %s22, 4
        %s427 = sadd.s32 %s426, 4
        %p428 = scmp.lt.s32.totalorder %s427, 15
        %s429 = scalar_select %p428, %s427, 15
        %s430 = smul.u32 2, %s429
      $region48: #{tpu_custom_call.1} parent=23 // pred_fallthru
        _
    $region24: #{tpu_custom_call.1} parent=5 // pred_fallthru
      _
    %p431 = scmp.le.s32.totalorder 1, %s14
    %p432 = scmp.lt.s32.totalorder %s14, 9
    %p433 = pnand %p431, %p432
    %p434 = pneg %p433
    // Predicated region
    $region49: #{tpu_custom_call.1} parent=5 // pred_check
      _
    $region50: #{tpu_custom_call.1} parent=5 // pred_check_branch
      %436 = sbr.rel (%p433) target = $region52
    $region51: #{tpu_custom_call.1} parent=5 // pred_region
      %s437 = ssub.s32 %s14, 1
      %s438 = smul.u32 8, %s24
      %p439 = scmp.lt.s32.totalorder %s23, 1
      %s440 = scalar_select %p439, %s23, 1
      %p441 = scmp.lt.s32.totalorder %s438, 31
      %s442 = scalar_select %p441, %s438, 31
      %s443 = smul.addr %s440, 32
      %s444 = sadd.s32 %s442, %s443
      %s445 = smul.addr %s444, 8
      %s446 = scalar_lea.vmem %s0, %s445
      %p447 = pneg %p54
      %p448 = pneg %p51
      %s449 = smul.u32 8, %s24
      %p450 = scmp.lt.s32.totalorder %s23, 1
      %s451 = scalar_select %p450, %s23, 1
      %p452 = scmp.lt.s32.totalorder %s449, 31
      %s453 = scalar_select %p452, %s449, 31
      %s454 = smul.addr %s451, 32
      %s455 = sadd.s32 %s453, %s454
      %s456 = smul.addr %s455, 8
      %s457 = scalar_lea.vmem %s1, %s456
      %p458 = pneg %p82
      %p459 = pneg %p79
      %s460 = smul.u32 %s24, 4
      %s461 = ssub.s32 %s460, 1
      %p462 = scmp.gt.s32.totalorder %s461, 0
      %s463 = scalar_select %p462, %s461, 0
      %s464 = smul.u32 2, %s463
      %p465 = scmp.lt.s32.totalorder %s23, 1
      %s466 = scalar_select %p465, %s23, 1
      %p467 = scmp.lt.s32.totalorder %s464, 31
      %s468 = scalar_select %p467, %s464, 31
      %s469 = smul.addr %s466, 32
      %s470 = sadd.s32 %s468, %s469
      %s471 = smul.addr %s470, 8
      %s472 = scalar_lea.vmem %s2, %s471
      %p473 = pneg %p118
      %p474 = pneg %p115
      %s475 = smul.u32 %s24, 4
      %s476 = sadd.s32 %s475, 4
      %p477 = scmp.lt.s32.totalorder %s476, 15
      %s478 = scalar_select %p477, %s476, 15
      %s479 = smul.u32 2, %s478
      %p480 = scmp.lt.s32.totalorder %s23, 1
      %s481 = scalar_select %p480, %s23, 1
      %p482 = scmp.lt.s32.totalorder %s479, 31
      %s483 = scalar_select %p482, %s479, 31
      %s484 = smul.addr %s481, 32
      %s485 = sadd.s32 %s483, %s484
      %s486 = smul.addr %s485, 8
      %s487 = scalar_lea.vmem %s3, %s486
      %p488 = pneg %p154
      %p489 = pneg %p151
      %s490 = smul.u32 %s24, 4
      %s491 = ssub.s32 %s490, 1
      %p492 = scmp.gt.s32.totalorder %s491, 0
      %s493 = scalar_select %p492, %s491, 0
      %s494 = smul.u32 2, %s493
      %p495 = scmp.lt.s32.totalorder %s23, 1
      %s496 = scalar_select %p495, %s23, 1
      %p497 = scmp.lt.s32.totalorder %s494, 31
      %s498 = scalar_select %p497, %s494, 31
      %s499 = smul.addr %s496, 32
      %s500 = sadd.s32 %s498, %s499
      %s501 = smul.addr %s500, 8
      %s502 = scalar_lea.vmem %s4, %s501
      %p503 = pneg %p190
      %p504 = pneg %p187
      %s505 = smul.u32 %s24, 4
      %s506 = sadd.s32 %s505, 4
      %p507 = scmp.lt.s32.totalorder %s506, 15
      %s508 = scalar_select %p507, %s506, 15
      %s509 = smul.u32 2, %s508
      %p510 = scmp.lt.s32.totalorder %s23, 1
      %s511 = scalar_select %p510, %s23, 1
      %p512 = scmp.lt.s32.totalorder %s509, 31
      %s513 = scalar_select %p512, %s509, 31
      %s514 = smul.addr %s511, 32
      %s515 = sadd.s32 %s513, %s514
      %s516 = smul.addr %s515, 8
      %s517 = scalar_lea.vmem %s5, %s516
      %p518 = pneg %p226
      %p519 = pneg %p223
      %p520 = pneg %p247
      %p521 = pneg %p244
      %p522 = pneg %p268
      %p523 = pneg %p265
      %p524 = pneg %p296
      %p525 = pneg %p293
      %s526 = smul.u32 8, %s24
      %p527 = scmp.lt.s32.totalorder %s23, 1
      %s528 = scalar_select %p527, %s23, 1
      %p529 = scmp.lt.s32.totalorder %s526, 31
      %s530 = scalar_select %p529, %s526, 31
      %s531 = smul.addr %s528, 32
      %s532 = sadd.s32 %s530, %s531
      %s533 = smul.addr %s532, 8
      %s534 = scalar_lea.vmem %s8, %s533
      %s535 = smul.u32 8, %s24
      %p536 = scmp.lt.s32.totalorder %s23, 1
      %s537 = scalar_select %p536, %s23, 1
      %p538 = scmp.lt.s32.totalorder %s535, 31
      %s539 = scalar_select %p538, %s535, 31
      %s540 = smul.addr %s537, 32
      %s541 = sadd.s32 %s539, %s540
      %s542 = smul.addr %s541, 8
      %s543 = scalar_lea.vmem %s0, %s542
      %s544 = smul.u32 8, %s24
      %s545 = smul.u32 8, %s24
      %p546 = scmp.lt.s32.totalorder %s23, 1
      %s547 = scalar_select %p546, %s23, 1
      %p548 = scmp.lt.s32.totalorder %s545, 31
      %s549 = scalar_select %p548, %s545, 31
      %s550 = smul.addr %s547, 32
      %s551 = sadd.s32 %s549, %s550
      %s552 = smul.addr %s551, 8
      %s553 = scalar_lea.vmem %s1, %s552
      %s554 = smul.u32 8, %s24
      %s555 = smul.u32 %s24, 4
      %s556 = ssub.s32 %s555, 1
      %p557 = scmp.gt.s32.totalorder %s556, 0
      %s558 = scalar_select %p557, %s556, 0
      %s559 = smul.u32 2, %s558
      %p560 = scmp.lt.s32.totalorder %s23, 1
      %s561 = scalar_select %p560, %s23, 1
      %p562 = scmp.lt.s32.totalorder %s559, 31
      %s563 = scalar_select %p562, %s559, 31
      %s564 = smul.addr %s561, 32
      %s565 = sadd.s32 %s563, %s564
      %s566 = smul.addr %s565, 8
      %s567 = scalar_lea.vmem %s2, %s566
      %s568 = smul.u32 %s24, 4
      %s569 = ssub.s32 %s568, 1
      %p570 = scmp.gt.s32.totalorder %s569, 0
      %s571 = scalar_select %p570, %s569, 0
      %s572 = smul.u32 2, %s571
      %s573 = smul.u32 %s24, 4
      %s574 = sadd.s32 %s573, 4
      %p575 = scmp.lt.s32.totalorder %s574, 15
      %s576 = scalar_select %p575, %s574, 15
      %s577 = smul.u32 2, %s576
      %p578 = scmp.lt.s32.totalorder %s23, 1
      %s579 = scalar_select %p578, %s23, 1
      %p580 = scmp.lt.s32.totalorder %s577, 31
      %s581 = scalar_select %p580, %s577, 31
      %s582 = smul.addr %s579, 32
      %s583 = sadd.s32 %s581, %s582
      %s584 = smul.addr %s583, 8
      %s585 = scalar_lea.vmem %s3, %s584
      %s586 = smul.u32 %s24, 4
      %s587 = sadd.s32 %s586, 4
      %p588 = scmp.lt.s32.totalorder %s587, 15
      %s589 = scalar_select %p588, %s587, 15
      %s590 = smul.u32 2, %s589
      %s591 = smul.u32 %s24, 4
      %s592 = ssub.s32 %s591, 1
      %p593 = scmp.gt.s32.totalorder %s592, 0
      %s594 = scalar_select %p593, %s592, 0
      %s595 = smul.u32 2, %s594
      %p596 = scmp.lt.s32.totalorder %s23, 1
      %s597 = scalar_select %p596, %s23, 1
      %p598 = scmp.lt.s32.totalorder %s595, 31
      %s599 = scalar_select %p598, %s595, 31
      %s600 = smul.addr %s597, 32
      %s601 = sadd.s32 %s599, %s600
      %s602 = smul.addr %s601, 8
      %s603 = scalar_lea.vmem %s4, %s602
      %s604 = smul.u32 %s24, 4
      %s605 = ssub.s32 %s604, 1
      %p606 = scmp.gt.s32.totalorder %s605, 0
      %s607 = scalar_select %p606, %s605, 0
      %s608 = smul.u32 2, %s607
      %s609 = smul.u32 %s24, 4
      %s610 = sadd.s32 %s609, 4
      %p611 = scmp.lt.s32.totalorder %s610, 15
      %s612 = scalar_select %p611, %s610, 15
      %s613 = smul.u32 2, %s612
      %p614 = scmp.lt.s32.totalorder %s23, 1
      %s615 = scalar_select %p614, %s23, 1
      %p616 = scmp.lt.s32.totalorder %s613, 31
      %s617 = scalar_select %p616, %s613, 31
      %s618 = smul.addr %s615, 32
      %s619 = sadd.s32 %s617, %s618
      %s620 = smul.addr %s619, 8
      %s621 = scalar_lea.vmem %s5, %s620
      %s622 = smul.u32 %s24, 4
      %s623 = sadd.s32 %s622, 4
      %p624 = scmp.lt.s32.totalorder %s623, 15
      %s625 = scalar_select %p624, %s623, 15
      %s626 = smul.u32 2, %s625
      %s627 = smul.u32 8, %s24
      %p628 = scmp.lt.s32.totalorder %s23, 1
      %s629 = scalar_select %p628, %s23, 1
      %p630 = scmp.lt.s32.totalorder %s627, 31
      %s631 = scalar_select %p630, %s627, 31
      %s632 = smul.addr %s629, 32
      %s633 = sadd.s32 %s631, %s632
      %s634 = smul.addr %s633, 8
      %s635 = scalar_lea.vmem %s8, %s634
      %s636 = smul.u32 8, %s24
      %v638 = vld [vmem:[%s543] sm:$0xff]
      %v639 = vld [vmem:[%s543 + $0x8] sm:$0xff]
      %v640 = vld [vmem:[%s543 + $0x10] sm:$0xff]
      %v641 = vld [vmem:[%s543 + $0x18] sm:$0xff]
      %v642 = vld [vmem:[%s543 + $0x20] sm:$0xff]
      %v643 = vld [vmem:[%s543 + $0x28] sm:$0xff]
      %v644 = vld [vmem:[%s543 + $0x30] sm:$0xff]
      %v645 = vld [vmem:[%s543 + $0x38] sm:$0xff]
      %v646 = vld [vmem:[%s553] sm:$0xff]
      %v647 = vld [vmem:[%s553 + $0x8] sm:$0xff]
      %v648 = vld [vmem:[%s553 + $0x10] sm:$0xff]
      %v649 = vld [vmem:[%s553 + $0x18] sm:$0xff]
      %v650 = vld [vmem:[%s553 + $0x20] sm:$0xff]
      %v651 = vld [vmem:[%s553 + $0x28] sm:$0xff]
      %v652 = vld [vmem:[%s553 + $0x30] sm:$0xff]
      %v653 = vld [vmem:[%s553 + $0x38] sm:$0xff]
      %v654 = vadd.f32 %v638, %v646
      %v655 = vadd.f32 %v639, %v647
      %v656 = vadd.f32 %v640, %v648
      %v657 = vadd.f32 %v641, %v649
      %v658 = vadd.f32 %v642, %v650
      %v659 = vadd.f32 %v643, %v651
      %v660 = vadd.f32 %v644, %v652
      %v661 = vadd.f32 %v645, %v653
      %v662 = vlaneseq
      %v663 = vshrl.u32 %v662, 7
      %v664 = vadd.s32 %v663, 8
      %v665 = vadd.s32 %v663, 16
      %v666 = vadd.s32 %v663, 24
      %v667 = vadd.s32 %v663, 32
      %v668 = vadd.s32 %v663, 40
      %v669 = vadd.s32 %v663, 48
      %v670 = vadd.s32 %v663, 56
      %vm671 = vcmp.lt.s32.totalorder %v663, 0
      %v672 = vsub.s32 0, %v663
      %v673 = vsel %vm671, %v672, %v663
      %v674 = vshrl.u32 %v673, 4
      %v675 = vand.u32 %v673, 15
      %v676 = vsub.s32 0, %v675
      %v677 = vsel %vm671, %v676, %v675
      %vm678 = vcmp.lt.s32.totalorder %v664, 0
      %v679 = vsub.s32 0, %v664
      %v680 = vsel %vm678, %v679, %v664
      %v681 = vshrl.u32 %v680, 4
      %v682 = vand.u32 %v680, 15
      %v683 = vsub.s32 0, %v682
      %v684 = vsel %vm678, %v683, %v682
      %vm685 = vcmp.lt.s32.totalorder %v665, 0
      %v686 = vsub.s32 0, %v665
      %v687 = vsel %vm685, %v686, %v665
      %v688 = vshrl.u32 %v687, 4
      %v689 = vand.u32 %v687, 15
      %v690 = vsub.s32 0, %v689
      %v691 = vsel %vm685, %v690, %v689
      %vm692 = vcmp.lt.s32.totalorder %v666, 0
      %v693 = vsub.s32 0, %v666
      %v694 = vsel %vm692, %v693, %v666
      %v695 = vshrl.u32 %v694, 4
      %v696 = vand.u32 %v694, 15
      %v697 = vsub.s32 0, %v696
      %v698 = vsel %vm692, %v697, %v696
      %vm699 = vcmp.lt.s32.totalorder %v667, 0
      %v700 = vsub.s32 0, %v667
      %v701 = vsel %vm699, %v700, %v667
      %v702 = vshrl.u32 %v701, 4
      %v703 = vand.u32 %v701, 15
      %v704 = vsub.s32 0, %v703
      %v705 = vsel %vm699, %v704, %v703
      %vm706 = vcmp.lt.s32.totalorder %v668, 0
      %v707 = vsub.s32 0, %v668
      %v708 = vsel %vm706, %v707, %v668
      %v709 = vshrl.u32 %v708, 4
      %v710 = vand.u32 %v708, 15
      %v711 = vsub.s32 0, %v710
      %v712 = vsel %vm706, %v711, %v710
      %vm713 = vcmp.lt.s32.totalorder %v669, 0
      %v714 = vsub.s32 0, %v669
      %v715 = vsel %vm713, %v714, %v669
      %v716 = vshrl.u32 %v715, 4
      %v717 = vand.u32 %v715, 15
      %v718 = vsub.s32 0, %v717
      %v719 = vsel %vm713, %v718, %v717
      %vm720 = vcmp.lt.s32.totalorder %v670, 0
      %v721 = vsub.s32 0, %v670
      %v722 = vsel %vm720, %v721, %v670
      %v723 = vshrl.u32 %v722, 4
      %v724 = vand.u32 %v722, 15
      %v725 = vsub.s32 0, %v724
      %v726 = vsel %vm720, %v725, %v724
      %vm727 = vcmp.ne.s32.totalorder %v677, 0
      %vm728 = vcmp.ne.s32.totalorder %v684, 0
      %vm729 = vcmp.ne.s32.totalorder %v691, 0
      %vm730 = vcmp.ne.s32.totalorder %v698, 0
      %vm731 = vcmp.ne.s32.totalorder %v705, 0
      %vm732 = vcmp.ne.s32.totalorder %v712, 0
      %vm733 = vcmp.ne.s32.totalorder %v719, 0
      %vm734 = vcmp.ne.s32.totalorder %v726, 0
      %vm735 = vcmp.lt.s32.totalorder %v677, 0
      %vm736 = vcmp.lt.s32.totalorder %v684, 0
      %vm737 = vcmp.lt.s32.totalorder %v691, 0
      %vm738 = vcmp.lt.s32.totalorder %v698, 0
      %vm739 = vcmp.lt.s32.totalorder %v705, 0
      %vm740 = vcmp.lt.s32.totalorder %v712, 0
      %vm741 = vcmp.lt.s32.totalorder %v719, 0
      %vm742 = vcmp.lt.s32.totalorder %v726, 0
      %vm743 = vmand %vm735, %vm727
      %vm744 = vmand %vm736, %vm728
      %vm745 = vmand %vm737, %vm729
      %vm746 = vmand %vm738, %vm730
      %vm747 = vmand %vm739, %vm731
      %vm748 = vmand %vm740, %vm732
      %vm749 = vmand %vm741, %vm733
      %vm750 = vmand %vm742, %vm734
      %v751 = vadd.s32 %v677, 16
      %v752 = vadd.s32 %v684, 16
      %v753 = vadd.s32 %v691, 16
      %v754 = vadd.s32 %v698, 16
      %v755 = vadd.s32 %v705, 16
      %v756 = vadd.s32 %v712, 16
      %v757 = vadd.s32 %v719, 16
      %v758 = vadd.s32 %v726, 16
      %v759 = vsel %vm743, %v751, %v677
      %v760 = vsel %vm744, %v752, %v684
      %v761 = vsel %vm745, %v753, %v691
      %v762 = vsel %vm746, %v754, %v698
      %v763 = vsel %vm747, %v755, %v705
      %v764 = vsel %vm748, %v756, %v712
      %v765 = vsel %vm749, %v757, %v719
      %v766 = vsel %vm750, %v758, %v726
      %vm767 = vcmp.eq.s32.totalorder %v759, 0
      %vm768 = vcmp.eq.s32.totalorder %v760, 0
      %vm769 = vcmp.eq.s32.totalorder %v761, 0
      %vm770 = vcmp.eq.s32.totalorder %v762, 0
      %vm771 = vcmp.eq.s32.totalorder %v763, 0
      %vm772 = vcmp.eq.s32.totalorder %v764, 0
      %vm773 = vcmp.eq.s32.totalorder %v765, 0
      %vm774 = vcmp.eq.s32.totalorder %v766, 0
      %v775 = vrot.slane %v654, 7
      %v776 = vrot.slane %v655, 7
      %v777 = vrot.slane %v656, 7
      %v778 = vrot.slane %v657, 7
      %v779 = vrot.slane %v658, 7
      %v780 = vrot.slane %v659, 7
      %v781 = vrot.slane %v660, 7
      %v782 = vrot.slane %v661, 7
      %vm783 = vcmp.lt.s32.totalorder %v663, 1
      %v784 = vsel %vm783, %v781, %v782
      %v785 = vsel %vm783, %v780, %v781
      %v786 = vsel %vm783, %v779, %v780
      %v787 = vsel %vm783, %v778, %v779
      %v788 = vsel %vm783, %v777, %v778
      %v789 = vsel %vm783, %v776, %v777
      %v790 = vsel %vm783, %v775, %v776
      %v791 = vsel %vm783, %v782, %v775
      %v792 = vsel %vm767, 1, 0
      %v793 = vsel %vm768, 1, 0
      %v794 = vsel %vm769, 1, 0
      %v795 = vsel %vm770, 1, 0
      %v796 = vsel %vm771, 1, 0
      %v797 = vsel %vm772, 1, 0
      %v798 = vsel %vm773, 1, 0
      %v799 = vsel %vm774, 1, 0
      %vm800 = vcmp.eq.s32.totalorder %v792, 1
      %vm801 = vcmp.eq.s32.totalorder %v793, 1
      %vm802 = vcmp.eq.s32.totalorder %v794, 1
      %vm803 = vcmp.eq.s32.totalorder %v795, 1
      %vm804 = vcmp.eq.s32.totalorder %v796, 1
      %vm805 = vcmp.eq.s32.totalorder %v797, 1
      %vm806 = vcmp.eq.s32.totalorder %v798, 1
      %vm807 = vcmp.eq.s32.totalorder %v799, 1
      %v808 = vsel %vm800, 0.0, %v791
      %v809 = vsel %vm801, 0.0, %v790
      %v810 = vsel %vm802, 0.0, %v789
      %v811 = vsel %vm803, 0.0, %v788
      %v812 = vsel %vm804, 0.0, %v787
      %v813 = vsel %vm805, 0.0, %v786
      %v814 = vsel %vm806, 0.0, %v785
      %v815 = vsel %vm807, 0.0, %v784
      %vm816 = vcmp.eq.s32.totalorder %v759, 15
      %vm817 = vcmp.eq.s32.totalorder %v760, 15
      %vm818 = vcmp.eq.s32.totalorder %v761, 15
      %vm819 = vcmp.eq.s32.totalorder %v762, 15
      %vm820 = vcmp.eq.s32.totalorder %v763, 15
      %vm821 = vcmp.eq.s32.totalorder %v764, 15
      %vm822 = vcmp.eq.s32.totalorder %v765, 15
      %vm823 = vcmp.eq.s32.totalorder %v766, 15
      %v824 = vrot.slane %v654, 1
      %v825 = vrot.slane %v655, 1
      %v826 = vrot.slane %v656, 1
      %v827 = vrot.slane %v657, 1
      %v828 = vrot.slane %v658, 1
      %v829 = vrot.slane %v659, 1
      %v830 = vrot.slane %v660, 1
      %v831 = vrot.slane %v661, 1
      %vm832 = vcmp.lt.s32.totalorder %v663, 7
      %v833 = vsel %vm832, %v830, %v831
      %v834 = vsel %vm832, %v829, %v830
      %v835 = vsel %vm832, %v828, %v829
      %v836 = vsel %vm832, %v827, %v828
      %v837 = vsel %vm832, %v826, %v827
      %v838 = vsel %vm832, %v825, %v826
      %v839 = vsel %vm832, %v824, %v825
      %v840 = vsel %vm832, %v831, %v824
      %v841 = vsel %vm816, 1, 0
      %v842 = vsel %vm817, 1, 0
      %v843 = vsel %vm818, 1, 0
      %v844 = vsel %vm819, 1, 0
      %v845 = vsel %vm820, 1, 0
      %v846 = vsel %vm821, 1, 0
      %v847 = vsel %vm822, 1, 0
      %v848 = vsel %vm823, 1, 0
      %vm849 = vcmp.eq.s32.totalorder %v841, 1
      %vm850 = vcmp.eq.s32.totalorder %v842, 1
      %vm851 = vcmp.eq.s32.totalorder %v843, 1
      %vm852 = vcmp.eq.s32.totalorder %v844, 1
      %vm853 = vcmp.eq.s32.totalorder %v845, 1
      %vm854 = vcmp.eq.s32.totalorder %v846, 1
      %vm855 = vcmp.eq.s32.totalorder %v847, 1
      %vm856 = vcmp.eq.s32.totalorder %v848, 1
      %v857 = vsel %vm849, 0.0, %v839
      %v858 = vsel %vm850, 0.0, %v838
      %v859 = vsel %vm851, 0.0, %v837
      %v860 = vsel %vm852, 0.0, %v836
      %v861 = vsel %vm853, 0.0, %v835
      %v862 = vsel %vm854, 0.0, %v834
      %v863 = vsel %vm855, 0.0, %v833
      %v864 = vsel %vm856, 0.0, %v840
      %v865 = vpack.c.bf16 %v809, %v808
      %v866 = vpack.c.bf16 %v811, %v810
      %v867 = vpack.c.bf16 %v813, %v812
      %v868 = vpack.c.bf16 %v815, %v814
      %v873 = vunpack.c.l.b16 %v865
      %v874 = vunpack.c.h.b16 %v865
      %v875 = vunpack.c.l.b16 %v866
      %v876 = vunpack.c.h.b16 %v866
      %v877 = vunpack.c.l.b16 %v867
      %v878 = vunpack.c.h.b16 %v867
      %v879 = vunpack.c.l.b16 %v868
      %v880 = vunpack.c.h.b16 %v868
      %v881 = vpack.c.b16 %v873, %v873
      %v882 = vpack.c.b16 %v874, %v874
      %v883 = vpack.c.b16 %v875, %v875
      %v884 = vpack.c.b16 %v876, %v876
      %v885 = vpack.c.b16 %v877, %v877
      %v886 = vpack.c.b16 %v878, %v878
      %v887 = vpack.c.b16 %v879, %v879
      %v888 = vpack.c.b16 %v880, %v880
      %vm897 = vcmask 257024
      %898 = vst.msk [vmem:[#allocation2 + $0x8] sm:$0xf] %vm897, %v881
      %899 = vst.msk [vmem:[#allocation2 + $0xc] sm:$0xf] %vm897, %v882
      %900 = vst.msk [vmem:[#allocation2 + $0x10] sm:$0xf] %vm897, %v883
      %901 = vst.msk [vmem:[#allocation2 + $0x14] sm:$0xf] %vm897, %v884
      %902 = vst.msk [vmem:[#allocation2 + $0x18] sm:$0xf] %vm897, %v885
      %903 = vst.msk [vmem:[#allocation2 + $0x1c] sm:$0xf] %vm897, %v886
      %904 = vst.msk [vmem:[#allocation2 + $0x20] sm:$0xf] %vm897, %v887
      %905 = vst.msk [vmem:[#allocation2 + $0x24] sm:$0xf] %vm897, %v888
      %v906 = vpack.c.bf16 %v655, %v654
      %v907 = vpack.c.bf16 %v657, %v656
      %v908 = vpack.c.bf16 %v659, %v658
      %v909 = vpack.c.bf16 %v661, %v660
      %v914 = vunpack.c.l.b16 %v906
      %v915 = vunpack.c.h.b16 %v906
      %v916 = vunpack.c.l.b16 %v907
      %v917 = vunpack.c.h.b16 %v907
      %v918 = vunpack.c.l.b16 %v908
      %v919 = vunpack.c.h.b16 %v908
      %v920 = vunpack.c.l.b16 %v909
      %v921 = vunpack.c.h.b16 %v909
      %v922 = vpack.c.b16 %v914, %v914
      %v923 = vpack.c.b16 %v915, %v915
      %v924 = vpack.c.b16 %v916, %v916
      %v925 = vpack.c.b16 %v917, %v917
      %v926 = vpack.c.b16 %v918, %v918
      %v927 = vpack.c.b16 %v919, %v919
      %v928 = vpack.c.b16 %v920, %v920
      %v929 = vpack.c.b16 %v921, %v921
      %930 = vrot.lane.b32.xlu0 %v922, 32
      %v931 = vpop.permute.xlu0 %930
      %932 = vrot.lane.b32.xlu0 %v923, 32
      %v933 = vpop.permute.xlu0 %932
      %934 = vrot.lane.b32.xlu0 %v924, 32
      %v935 = vpop.permute.xlu0 %934
      %936 = vrot.lane.b32.xlu0 %v925, 32
      %v937 = vpop.permute.xlu0 %936
      %938 = vrot.lane.b32.xlu0 %v926, 32
      %v939 = vpop.permute.xlu0 %938
      %940 = vrot.lane.b32.xlu0 %v927, 32
      %v941 = vpop.permute.xlu0 %940
      %942 = vrot.lane.b32.xlu0 %v928, 32
      %v943 = vpop.permute.xlu0 %942
      %944 = vrot.lane.b32.xlu0 %v929, 32
      %v945 = vpop.permute.xlu0 %944
      %vm954 = vcmask 519424
      %955 = vst.msk [vmem:[#allocation2 + $0x8] sm:$0xf] %vm954, %v931
      %956 = vst.msk [vmem:[#allocation2 + $0xc] sm:$0xf] %vm954, %v933
      %957 = vst.msk [vmem:[#allocation2 + $0x10] sm:$0xf] %vm954, %v935
      %958 = vst.msk [vmem:[#allocation2 + $0x14] sm:$0xf] %vm954, %v937
      %959 = vst.msk [vmem:[#allocation2 + $0x18] sm:$0xf] %vm954, %v939
      %960 = vst.msk [vmem:[#allocation2 + $0x1c] sm:$0xf] %vm954, %v941
      %961 = vst.msk [vmem:[#allocation2 + $0x20] sm:$0xf] %vm954, %v943
      %962 = vst.msk [vmem:[#allocation2 + $0x24] sm:$0xf] %vm954, %v945
      %v963 = vpack.c.bf16 %v858, %v857
      %v964 = vpack.c.bf16 %v860, %v859
      %v965 = vpack.c.bf16 %v862, %v861
      %v966 = vpack.c.bf16 %v864, %v863
      %v971 = vunpack.c.l.b16 %v963
      %v972 = vunpack.c.h.b16 %v963
      %v973 = vunpack.c.l.b16 %v964
      %v974 = vunpack.c.h.b16 %v964
      %v975 = vunpack.c.l.b16 %v965
      %v976 = vunpack.c.h.b16 %v965
      %v977 = vunpack.c.l.b16 %v966
      %v978 = vunpack.c.h.b16 %v966
      %v979 = vpack.c.b16 %v971, %v971
      %v980 = vpack.c.b16 %v972, %v972
      %v981 = vpack.c.b16 %v973, %v973
      %v982 = vpack.c.b16 %v974, %v974
      %v983 = vpack.c.b16 %v975, %v975
      %v984 = vpack.c.b16 %v976, %v976
      %v985 = vpack.c.b16 %v977, %v977
      %v986 = vpack.c.b16 %v978, %v978
      %987 = vrot.lane.b32.xlu0 %v979, 64
      %v988 = vpop.permute.xlu0 %987
      %989 = vrot.lane.b32.xlu0 %v980, 64
      %v990 = vpop.permute.xlu0 %989
      %991 = vrot.lane.b32.xlu0 %v981, 64
      %v992 = vpop.permute.xlu0 %991
      %993 = vrot.lane.b32.xlu0 %v982, 64
      %v994 = vpop.permute.xlu0 %993
      %995 = vrot.lane.b32.xlu0 %v983, 64
      %v996 = vpop.permute.xlu0 %995
      %997 = vrot.lane.b32.xlu0 %v984, 64
      %v998 = vpop.permute.xlu0 %997
      %999 = vrot.lane.b32.xlu0 %v985, 64
      %v1000 = vpop.permute.xlu0 %999
      %1001 = vrot.lane.b32.xlu0 %v986, 64
      %v1002 = vpop.permute.xlu0 %1001
      %vm1011 = vcmask 781824
      %1012 = vst.msk [vmem:[#allocation2 + $0x8] sm:$0xf] %vm1011, %v988
      %1013 = vst.msk [vmem:[#allocation2 + $0xc] sm:$0xf] %vm1011, %v990
      %1014 = vst.msk [vmem:[#allocation2 + $0x10] sm:$0xf] %vm1011, %v992
      %1015 = vst.msk [vmem:[#allocation2 + $0x14] sm:$0xf] %vm1011, %v994
      %1016 = vst.msk [vmem:[#allocation2 + $0x18] sm:$0xf] %vm1011, %v996
      %1017 = vst.msk [vmem:[#allocation2 + $0x1c] sm:$0xf] %vm1011, %v998
      %1018 = vst.msk [vmem:[#allocation2 + $0x20] sm:$0xf] %vm1011, %v1000
      %1019 = vst.msk [vmem:[#allocation2 + $0x24] sm:$0xf] %vm1011, %v1002
      %v1020 = vld [vmem:[%s567] sm:$0xff]
      %v1021 = vld [vmem:[%s567 + $0x8] sm:$0xff]
      %v1022 = vld [vmem:[%s585] sm:$0xff]
      %v1023 = vld [vmem:[%s585 + $0x8] sm:$0xff]
      %v1024 = vld [vmem:[%s603] sm:$0xff]
      %v1025 = vld [vmem:[%s603 + $0x8] sm:$0xff]
      %v1026 = vadd.f32 %v1020, %v1024
      %v1027 = vadd.f32 %v1021, %v1025
      %v1028 = vld [vmem:[%s621] sm:$0xff]
      %v1029 = vld [vmem:[%s621 + $0x8] sm:$0xff]
      %v1030 = vadd.f32 %v1022, %v1028
      %v1031 = vadd.f32 %v1023, %v1029
      %p1032 = scmp.gt.s32.totalorder %s24, 0
      %s1033 = scalar_select %p1032, 1, 0
      %s1034 = scvt.s32.f32 %s1033
      %v1035 = vstv %s1034
      %v1036 = vmul.f32 %v1026, %v1035
      %v1037 = vmul.f32 %v1027, %v1035
      %p1038 = scmp.lt.s32.totalorder %s24, 3
      %s1039 = scalar_select %p1038, 1, 0
      %s1040 = scvt.s32.f32 %s1039
      %v1041 = vstv %s1040
      %v1042 = vmul.f32 %v1030, %v1041
      %v1043 = vmul.f32 %v1031, %v1041
      %v1044 = vrot.slane %v1036, 7
      %v1045 = vrot.slane %v1037, 7
      %v1046 = vsel %vm783, %v1044, %v1045
      %v1047 = vsel %vm783, %v1045, %v1044
      %v1048 = vsel %vm800, 0.0, %v1047
      %v1049 = vsel %vm801, 0.0, %v1046
      %v1050 = vrot.slane %v1036, 1
      %v1051 = vrot.slane %v1037, 1
      %v1052 = vsel %vm832, %v1050, %v1051
      %v1053 = vsel %vm832, %v1051, %v1050
      %v1054 = vsel %vm849, 0.0, %v1052
      %v1055 = vsel %vm850, 0.0, %v1053
      %v1056 = vpack.c.bf16 %v1049, %v1048
      %v1058 = vunpack.c.l.b16 %v1056
      %v1059 = vunpack.c.h.b16 %v1056
      %v1060 = vpack.c.b16 %v1058, %v1058
      %v1061 = vpack.c.b16 %v1059, %v1059
      %1064 = vst.msk [vmem:[#allocation2] sm:$0xf] %vm897, %v1060
      %1065 = vst.msk [vmem:[#allocation2 + $0x4] sm:$0xf] %vm897, %v1061
      %v1066 = vpack.c.bf16 %v1037, %v1036
      %v1068 = vunpack.c.l.b16 %v1066
      %v1069 = vunpack.c.h.b16 %v1066
      %v1070 = vpack.c.b16 %v1068, %v1068
      %v1071 = vpack.c.b16 %v1069, %v1069
      %1072 = vrot.lane.b32.xlu0 %v1070, 32
      %v1073 = vpop.permute.xlu0 %1072
      %1074 = vrot.lane.b32.xlu0 %v1071, 32
      %v1075 = vpop.permute.xlu0 %1074
      %1078 = vst.msk [vmem:[#allocation2] sm:$0xf] %vm954, %v1073
      %1079 = vst.msk [vmem:[#allocation2 + $0x4] sm:$0xf] %vm954, %v1075
      %v1080 = vpack.c.bf16 %v1055, %v1054
      %v1082 = vunpack.c.l.b16 %v1080
      %v1083 = vunpack.c.h.b16 %v1080
      %v1084 = vpack.c.b16 %v1082, %v1082
      %v1085 = vpack.c.b16 %v1083, %v1083
      %1086 = vrot.lane.b32.xlu0 %v1084, 64
      %v1087 = vpop.permute.xlu0 %1086
      %1088 = vrot.lane.b32.xlu0 %v1085, 64
      %v1089 = vpop.permute.xlu0 %1088
      %1092 = vst.msk [vmem:[#allocation2] sm:$0xf] %vm1011, %v1087
      %1093 = vst.msk [vmem:[#allocation2 + $0x4] sm:$0xf] %vm1011, %v1089
      %v1094 = vrot.slane %v1042, 7
      %v1095 = vrot.slane %v1043, 7
      %v1096 = vsel %vm783, %v1094, %v1095
      %v1097 = vsel %vm783, %v1095, %v1094
      %v1098 = vsel %vm800, 0.0, %v1097
      %v1099 = vsel %vm801, 0.0, %v1096
      %v1100 = vrot.slane %v1042, 1
      %v1101 = vrot.slane %v1043, 1
      %v1102 = vsel %vm832, %v1100, %v1101
      %v1103 = vsel %vm832, %v1101, %v1100
      %v1104 = vsel %vm849, 0.0, %v1102
      %v1105 = vsel %vm850, 0.0, %v1103
      %v1106 = vpack.c.bf16 %v1099, %v1098
      %v1108 = vunpack.c.l.b16 %v1106
      %v1109 = vunpack.c.h.b16 %v1106
      %v1110 = vpack.c.b16 %v1108, %v1108
      %v1111 = vpack.c.b16 %v1109, %v1109
      %1114 = vst.msk [vmem:[#allocation2 + $0x28] sm:$0xf] %vm897, %v1110
      %1115 = vst.msk [vmem:[#allocation2 + $0x2c] sm:$0xf] %vm897, %v1111
      %v1116 = vpack.c.bf16 %v1043, %v1042
      %v1118 = vunpack.c.l.b16 %v1116
      %v1119 = vunpack.c.h.b16 %v1116
      %v1120 = vpack.c.b16 %v1118, %v1118
      %v1121 = vpack.c.b16 %v1119, %v1119
      %1122 = vrot.lane.b32.xlu0 %v1120, 32
      %v1123 = vpop.permute.xlu0 %1122
      %1124 = vrot.lane.b32.xlu0 %v1121, 32
      %v1125 = vpop.permute.xlu0 %1124
      %1128 = vst.msk [vmem:[#allocation2 + $0x28] sm:$0xf] %vm954, %v1123
      %1129 = vst.msk [vmem:[#allocation2 + $0x2c] sm:$0xf] %vm954, %v1125
      %v1130 = vpack.c.bf16 %v1105, %v1104
      %v1132 = vunpack.c.l.b16 %v1130
      %v1133 = vunpack.c.h.b16 %v1130
      %v1134 = vpack.c.b16 %v1132, %v1132
      %v1135 = vpack.c.b16 %v1133, %v1133
      %1136 = vrot.lane.b32.xlu0 %v1134, 64
      %v1137 = vpop.permute.xlu0 %1136
      %1138 = vrot.lane.b32.xlu0 %v1135, 64
      %v1139 = vpop.permute.xlu0 %1138
      %1142 = vst.msk [vmem:[#allocation2 + $0x28] sm:$0xf] %vm1011, %v1137
      %1143 = vst.msk [vmem:[#allocation2 + $0x2c] sm:$0xf] %vm1011, %v1139
      %v1144 = vld [vmem:[#allocation2] sm:$0xf]
      %v1145 = vld [vmem:[#allocation2 + $0x4] sm:$0xf]
      %v1146 = vld [vmem:[#allocation2 + $0x8] sm:$0xf]
      %v1147 = vld [vmem:[#allocation2 + $0xc] sm:$0xf]
      %v1148 = vld [vmem:[#allocation2 + $0x10] sm:$0xf]
      %v1149 = vld [vmem:[#allocation2 + $0x14] sm:$0xf]
      %v1150 = vld [vmem:[#allocation2 + $0x18] sm:$0xf]
      %v1151 = vld [vmem:[#allocation2 + $0x1c] sm:$0xf]
      %v1152 = vld [vmem:[%s6] sm:$0xf]
      %v1153 = vld [vmem:[%s6 + $0x4] sm:$0xf]
      %v1154 = vld [vmem:[%s6 + $0x8] sm:$0xf]
      %v1155 = vld [vmem:[%s6 + $0xc] sm:$0xf]
      %v1156 = vld [vmem:[%s6 + $0x10] sm:$0xf]
      %v1157 = vld [vmem:[%s6 + $0x14] sm:$0xf]
      %v1158 = vld [vmem:[%s6 + $0x18] sm:$0xf]
      %v1159 = vld [vmem:[%s6 + $0x1c] sm:$0xf]
      %v1160 = vld [vmem:[%s6 + $0x20] sm:$0xf]
      %v1161 = vld [vmem:[%s6 + $0x24] sm:$0xf]
      %v1162 = vld [vmem:[%s6 + $0x28] sm:$0xf]
      %v1163 = vld [vmem:[%s6 + $0x2c] sm:$0xf]
      %v1164 = vld [vmem:[#allocation2 + $0x20] sm:$0xf]
      %v1165 = vld [vmem:[#allocation2 + $0x24] sm:$0xf]
      %s1166 = scalar_lea.vmem %s6, 48
      %v1167 = vld [vmem:[%s1166] sm:$0xf]
      %v1168 = vld [vmem:[%s1166 + $0x4] sm:$0xf]
      %v1169 = vld [vmem:[%s1166 + $0x8] sm:$0xf]
      %v1170 = vld [vmem:[%s1166 + $0xc] sm:$0xf]
      %v1171 = vld [vmem:[%s1166 + $0x10] sm:$0xf]
      %v1172 = vld [vmem:[%s1166 + $0x14] sm:$0xf]
      %v1173 = vld [vmem:[%s1166 + $0x18] sm:$0xf]
      %v1174 = vld [vmem:[%s1166 + $0x1c] sm:$0xf]
      %v1175 = vld [vmem:[%s1166 + $0x20] sm:$0xf]
      %v1176 = vld [vmem:[%s1166 + $0x24] sm:$0xf]
      %v1177 = vld [vmem:[%s1166 + $0x28] sm:$0xf]
      %v1178 = vld [vmem:[%s1166 + $0x2c] sm:$0xf]
      %v1187 = vunpack.c.l.b16 %v1146
      %v1188 = vunpack.c.l.b16 %v1147
      %v1189 = vunpack.c.l.b16 %v1148
      %v1190 = vunpack.c.l.b16 %v1149
      %v1191 = vunpack.c.l.b16 %v1150
      %v1192 = vunpack.c.l.b16 %v1151
      %v1193 = vunpack.c.l.b16 %v1164
      %v1194 = vunpack.c.l.b16 %v1165
      %v1195 = vpack.c.b16 %v1188, %v1187
      %v1196 = vpack.c.b16 %v1190, %v1189
      %v1197 = vpack.c.b16 %v1192, %v1191
      %v1198 = vpack.c.b16 %v1194, %v1193
      %v1211 = vunpack.c.l.b16 %v1167
      %v1212 = vunpack.c.l.b16 %v1168
      %v1213 = vunpack.c.l.b16 %v1169
      %v1214 = vunpack.c.l.b16 %v1170
      %v1215 = vunpack.c.l.b16 %v1171
      %v1216 = vunpack.c.l.b16 %v1172
      %v1217 = vunpack.c.l.b16 %v1173
      %v1218 = vunpack.c.l.b16 %v1174
      %v1219 = vunpack.c.l.b16 %v1175
      %v1220 = vunpack.c.l.b16 %v1176
      %v1221 = vunpack.c.l.b16 %v1177
      %v1222 = vunpack.c.l.b16 %v1178
      %v1223 = vpack.c.b16 %v1212, %v1211
      %v1224 = vpack.c.b16 %v1214, %v1213
      %v1225 = vpack.c.b16 %v1216, %v1215
      %v1226 = vpack.c.b16 %v1218, %v1217
      %v1227 = vpack.c.b16 %v1220, %v1219
      %v1228 = vpack.c.b16 %v1222, %v1221
      %vm1235 = vcmask 785408
      %v1237 = vsel %vm1235, %v1195, 0
      %v1240 = vsel %vm1235, %v1196, 0
      %v1243 = vsel %vm1235, %v1197, 0
      %v1246 = vsel %vm1235, %v1198, 0
      %1248 = vmatprep.subr.bf16.mxu0 0
      %1249 = vmatpush1.bf16.msra.mxu0 0
      %1250 = vmatprep.subr.bf16.mxu0 0
      %1251 = vmatpush1.bf16.msra.mxu0 0
      %1252 = vmatprep.subr.bf16.mxu0 0
      %1253 = vmatpush1.bf16.msra.mxu0 %v1228
      %1254 = vmatprep.subr.bf16.mxu0 0
      %1255 = vmatpush1.bf16.msra.mxu0 %v1227
      %1256 = vmatprep.subr.bf16.mxu0 0
      %1257 = vmatpush1.bf16.msra.mxu0 %v1226
      %1258 = vmatprep.subr.bf16.mxu0 0
      %1259 = vmatpush1.bf16.msra.mxu0 %v1225
      %1260 = vmatprep.subr.bf16.mxu0 0
      %1261 = vmatpush1.bf16.msra.mxu0 %v1224
      %1262 = vmatprep.subr.bf16.mxu0 0
      %1263 = vmatpush1.bf16.msra.mxu0 %v1223
      %1264 = vmatprep.subr.bf16.mxu0 0
      %1265 = vmatpush2.bf16.msra.mxu0 0
      %1266 = vmatprep.subr.bf16.mxu0 0
      %1267 = vmatpush2.bf16.msra.mxu0 0
      %1268 = vmatprep.subr.bf16.mxu0 0
      %1269 = vmatpush2.bf16.msra.mxu0 0
      %1270 = vmatprep.subr.bf16.mxu0 0
      %1271 = vmatpush2.bf16.msra.mxu0 0
      %1272 = vmatprep.subr.bf16.mxu0 0
      %1273 = vmatpush2.bf16.msra.mxu0 0
      %1274 = vmatprep.subr.bf16.mxu0 0
      %1275 = vmatpush2.bf16.msra.mxu0 0
      %1276 = vmatprep.subr.bf16.mxu0 0
      %1277 = vmatpush2.bf16.msra.mxu0 0
      %1278 = vmatprep.subr.bf16.mxu0 0
      %1279 = vmatpush2.bf16.msra.mxu0 0
      %1280 = vmatprep.mubr.bf16.mxu0 0
      %1281 = vmatmul.mubr.bf16.gmra.mxu0 %v1237
      %v1282 = vpop.f32.mrf.mxu0
      %v1283 = vadd.f32 0.0, %v1282
      %v1284 = vpop.f32.mrf.mxu0
      %v1285 = vpop.f32.mrf.mxu0
      %v1286 = vadd.f32 0.0, %v1285
      %v1287 = vpop.f32.mrf.mxu0
      %1288 = vmatprep.mubr.bf16.mxu0 0
      %1289 = vmatmul.mubr.bf16.gmra.mxu0 %v1240
      %v1290 = vpop.f32.mrf.mxu0
      %v1291 = vadd.f32 0.0, %v1290
      %v1292 = vpop.f32.mrf.mxu0
      %v1293 = vpop.f32.mrf.mxu0
      %v1294 = vadd.f32 0.0, %v1293
      %v1295 = vpop.f32.mrf.mxu0
      %1296 = vmatprep.mubr.bf16.mxu0 0
      %1297 = vmatmul.mubr.bf16.gmra.mxu0 %v1243
      %v1298 = vpop.f32.mrf.mxu0
      %v1299 = vadd.f32 0.0, %v1298
      %v1300 = vpop.f32.mrf.mxu0
      %v1301 = vpop.f32.mrf.mxu0
      %v1302 = vadd.f32 0.0, %v1301
      %v1303 = vpop.f32.mrf.mxu0
      %1304 = vmatprep.mubr.bf16.mxu0 0
      %1305 = vmatmul.mubr.bf16.gmra.mxu0 %v1246
      %v1306 = vpop.f32.mrf.mxu0
      %v1307 = vadd.f32 0.0, %v1306
      %v1308 = vpop.f32.mrf.mxu0
      %v1309 = vpop.f32.mrf.mxu0
      %v1310 = vadd.f32 0.0, %v1309
      %v1311 = vpop.f32.mrf.mxu0
      %1312 = vdwg.mxu0
      %v1315 = vunpack.c.l.b16 %v1144
      %v1316 = vunpack.c.l.b16 %v1145
      %v1317 = vpack.c.b16 %v1316, %v1315
      %v1330 = vunpack.c.l.b16 %v1152
      %v1331 = vunpack.c.l.b16 %v1153
      %v1332 = vunpack.c.l.b16 %v1154
      %v1333 = vunpack.c.l.b16 %v1155
      %v1334 = vunpack.c.l.b16 %v1156
      %v1335 = vunpack.c.l.b16 %v1157
      %v1336 = vunpack.c.l.b16 %v1158
      %v1337 = vunpack.c.l.b16 %v1159
      %v1338 = vunpack.c.l.b16 %v1160
      %v1339 = vunpack.c.l.b16 %v1161
      %v1340 = vunpack.c.l.b16 %v1162
      %v1341 = vunpack.c.l.b16 %v1163
      %v1342 = vpack.c.b16 %v1331, %v1330
      %v1343 = vpack.c.b16 %v1333, %v1332
      %v1344 = vpack.c.b16 %v1335, %v1334
      %v1345 = vpack.c.b16 %v1337, %v1336
      %v1346 = vpack.c.b16 %v1339, %v1338
      %v1347 = vpack.c.b16 %v1341, %v1340
      %v1355 = vsel %vm1235, %v1317, 0
      %1357 = vmatprep.subr.bf16.mxu0 0
      %1358 = vmatpush1.bf16.msra.mxu0 0
      %1359 = vmatprep.subr.bf16.mxu0 0
      %1360 = vmatpush1.bf16.msra.mxu0 0
      %1361 = vmatprep.subr.bf16.mxu0 0
      %1362 = vmatpush1.bf16.msra.mxu0 %v1347
      %1363 = vmatprep.subr.bf16.mxu0 0
      %1364 = vmatpush1.bf16.msra.mxu0 %v1346
      %1365 = vmatprep.subr.bf16.mxu0 0
      %1366 = vmatpush1.bf16.msra.mxu0 %v1345
      %1367 = vmatprep.subr.bf16.mxu0 0
      %1368 = vmatpush1.bf16.msra.mxu0 %v1344
      %1369 = vmatprep.subr.bf16.mxu0 0
      %1370 = vmatpush1.bf16.msra.mxu0 %v1343
      %1371 = vmatprep.subr.bf16.mxu0 0
      %1372 = vmatpush1.bf16.msra.mxu0 %v1342
      %1373 = vmatprep.subr.bf16.mxu0 0
      %1374 = vmatpush2.bf16.msra.mxu0 0
      %1375 = vmatprep.subr.bf16.mxu0 0
      %1376 = vmatpush2.bf16.msra.mxu0 0
      %1377 = vmatprep.subr.bf16.mxu0 0
      %1378 = vmatpush2.bf16.msra.mxu0 0
      %1379 = vmatprep.subr.bf16.mxu0 0
      %1380 = vmatpush2.bf16.msra.mxu0 0
      %1381 = vmatprep.subr.bf16.mxu0 0
      %1382 = vmatpush2.bf16.msra.mxu0 0
      %1383 = vmatprep.subr.bf16.mxu0 0
      %1384 = vmatpush2.bf16.msra.mxu0 0
      %1385 = vmatprep.subr.bf16.mxu0 0
      %1386 = vmatpush2.bf16.msra.mxu0 0
      %1387 = vmatprep.subr.bf16.mxu0 0
      %1388 = vmatpush2.bf16.msra.mxu0 0
      %1389 = vmatprep.mubr.bf16.mxu0 0
      %1390 = vmatmul.mubr.bf16.gmra.mxu0 %v1355
      %v1391 = vpop.f32.mrf.mxu0
      %v1392 = vadd.f32 %v1283, %v1391
      %v1393 = vpop.f32.mrf.mxu0
      %v1394 = vpop.f32.mrf.mxu0
      %v1395 = vadd.f32 %v1286, %v1394
      %v1396 = vpop.f32.mrf.mxu0
      %1397 = vmatprep.mubr.bf16.mxu0 0
      %1398 = vmatmul.mubr.bf16.gmra.mxu0 %v1237
      %v1399 = vpop.f32.mrf.mxu0
      %v1400 = vadd.f32 %v1291, %v1399
      %v1401 = vpop.f32.mrf.mxu0
      %v1402 = vpop.f32.mrf.mxu0
      %v1403 = vadd.f32 %v1294, %v1402
      %v1404 = vpop.f32.mrf.mxu0
      %1405 = vmatprep.mubr.bf16.mxu0 0
      %1406 = vmatmul.mubr.bf16.gmra.mxu0 %v1240
      %v1407 = vpop.f32.mrf.mxu0
      %v1408 = vadd.f32 %v1299, %v1407
      %v1409 = vpop.f32.mrf.mxu0
      %v1410 = vpop.f32.mrf.mxu0
      %v1411 = vadd.f32 %v1302, %v1410
      %v1412 = vpop.f32.mrf.mxu0
      %1413 = vmatprep.mubr.bf16.mxu0 0
      %1414 = vmatmul.mubr.bf16.gmra.mxu0 %v1243
      %v1415 = vpop.f32.mrf.mxu0
      %v1416 = vadd.f32 %v1307, %v1415
      %v1417 = vpop.f32.mrf.mxu0
      %v1418 = vpop.f32.mrf.mxu0
      %v1419 = vadd.f32 %v1310, %v1418
      %v1420 = vpop.f32.mrf.mxu0
      %1421 = vdwg.mxu0
      %v1422 = vld [vmem:[#allocation2 + $0x10] sm:$0xf]
      %v1423 = vld [vmem:[#allocation2 + $0x14] sm:$0xf]
      %v1424 = vld [vmem:[#allocation2 + $0x18] sm:$0xf]
      %v1425 = vld [vmem:[#allocation2 + $0x1c] sm:$0xf]
      %v1426 = vld [vmem:[#allocation2 + $0x20] sm:$0xf]
      %v1427 = vld [vmem:[#allocation2 + $0x24] sm:$0xf]
      %v1428 = vld [vmem:[#allocation2 + $0x28] sm:$0xf]
      %v1429 = vld [vmem:[#allocation2 + $0x2c] sm:$0xf]
      %s1430 = scalar_lea.vmem %s6, 96
      %v1431 = vld [vmem:[%s1430] sm:$0xf]
      %v1432 = vld [vmem:[%s1430 + $0x4] sm:$0xf]
      %v1433 = vld [vmem:[%s1430 + $0x8] sm:$0xf]
      %v1434 = vld [vmem:[%s1430 + $0xc] sm:$0xf]
      %v1435 = vld [vmem:[%s1430 + $0x10] sm:$0xf]
      %v1436 = vld [vmem:[%s1430 + $0x14] sm:$0xf]
      %v1437 = vld [vmem:[%s1430 + $0x18] sm:$0xf]
      %v1438 = vld [vmem:[%s1430 + $0x1c] sm:$0xf]
      %v1439 = vld [vmem:[%s1430 + $0x20] sm:$0xf]
      %v1440 = vld [vmem:[%s1430 + $0x24] sm:$0xf]
      %v1441 = vld [vmem:[%s1430 + $0x28] sm:$0xf]
      %v1442 = vld [vmem:[%s1430 + $0x2c] sm:$0xf]
      %v1451 = vunpack.c.l.b16 %v1422
      %v1452 = vunpack.c.l.b16 %v1423
      %v1453 = vunpack.c.l.b16 %v1424
      %v1454 = vunpack.c.l.b16 %v1425
      %v1455 = vunpack.c.l.b16 %v1426
      %v1456 = vunpack.c.l.b16 %v1427
      %v1457 = vunpack.c.l.b16 %v1428
      %v1458 = vunpack.c.l.b16 %v1429
      %v1459 = vpack.c.b16 %v1452, %v1451
      %v1460 = vpack.c.b16 %v1454, %v1453
      %v1461 = vpack.c.b16 %v1456, %v1455
      %v1462 = vpack.c.b16 %v1458, %v1457
      %v1475 = vunpack.c.l.b16 %v1431
      %v1476 = vunpack.c.l.b16 %v1432
      %v1477 = vunpack.c.l.b16 %v1433
      %v1478 = vunpack.c.l.b16 %v1434
      %v1479 = vunpack.c.l.b16 %v1435
      %v1480 = vunpack.c.l.b16 %v1436
      %v1481 = vunpack.c.l.b16 %v1437
      %v1482 = vunpack.c.l.b16 %v1438
      %v1483 = vunpack.c.l.b16 %v1439
      %v1484 = vunpack.c.l.b16 %v1440
      %v1485 = vunpack.c.l.b16 %v1441
      %v1486 = vunpack.c.l.b16 %v1442
      %v1487 = vpack.c.b16 %v1476, %v1475
      %v1488 = vpack.c.b16 %v1478, %v1477
      %v1489 = vpack.c.b16 %v1480, %v1479
      %v1490 = vpack.c.b16 %v1482, %v1481
      %v1491 = vpack.c.b16 %v1484, %v1483
      %v1492 = vpack.c.b16 %v1486, %v1485
      %v1500 = vsel %vm1235, %v1459, 0
      %v1503 = vsel %vm1235, %v1460, 0
      %v1506 = vsel %vm1235, %v1461, 0
      %v1509 = vsel %vm1235, %v1462, 0
      %1511 = vmatprep.subr.bf16.mxu0 0
      %1512 = vmatpush1.bf16.msra.mxu0 0
      %1513 = vmatprep.subr.bf16.mxu0 0
      %1514 = vmatpush1.bf16.msra.mxu0 0
      %1515 = vmatprep.subr.bf16.mxu0 0
      %1516 = vmatpush1.bf16.msra.mxu0 %v1492
      %1517 = vmatprep.subr.bf16.mxu0 0
      %1518 = vmatpush1.bf16.msra.mxu0 %v1491
      %1519 = vmatprep.subr.bf16.mxu0 0
      %1520 = vmatpush1.bf16.msra.mxu0 %v1490
      %1521 = vmatprep.subr.bf16.mxu0 0
      %1522 = vmatpush1.bf16.msra.mxu0 %v1489
      %1523 = vmatprep.subr.bf16.mxu0 0
      %1524 = vmatpush1.bf16.msra.mxu0 %v1488
      %1525 = vmatprep.subr.bf16.mxu0 0
      %1526 = vmatpush1.bf16.msra.mxu0 %v1487
      %1527 = vmatprep.subr.bf16.mxu0 0
      %1528 = vmatpush2.bf16.msra.mxu0 0
      %1529 = vmatprep.subr.bf16.mxu0 0
      %1530 = vmatpush2.bf16.msra.mxu0 0
      %1531 = vmatprep.subr.bf16.mxu0 0
      %1532 = vmatpush2.bf16.msra.mxu0 0
      %1533 = vmatprep.subr.bf16.mxu0 0
      %1534 = vmatpush2.bf16.msra.mxu0 0
      %1535 = vmatprep.subr.bf16.mxu0 0
      %1536 = vmatpush2.bf16.msra.mxu0 0
      %1537 = vmatprep.subr.bf16.mxu0 0
      %1538 = vmatpush2.bf16.msra.mxu0 0
      %1539 = vmatprep.subr.bf16.mxu0 0
      %1540 = vmatpush2.bf16.msra.mxu0 0
      %1541 = vmatprep.subr.bf16.mxu0 0
      %1542 = vmatpush2.bf16.msra.mxu0 0
      %1543 = vmatprep.mubr.bf16.mxu0 0
      %1544 = vmatmul.mubr.bf16.gmra.mxu0 %v1500
      %v1545 = vpop.f32.mrf.mxu0
      %v1546 = vadd.f32 0.0, %v1545
      %v1547 = vpop.f32.mrf.mxu0
      %v1548 = vpop.f32.mrf.mxu0
      %v1549 = vadd.f32 0.0, %v1548
      %v1550 = vpop.f32.mrf.mxu0
      %1551 = vmatprep.mubr.bf16.mxu0 0
      %1552 = vmatmul.mubr.bf16.gmra.mxu0 %v1503
      %v1553 = vpop.f32.mrf.mxu0
      %v1554 = vadd.f32 0.0, %v1553
      %v1555 = vpop.f32.mrf.mxu0
      %v1556 = vpop.f32.mrf.mxu0
      %v1557 = vadd.f32 0.0, %v1556
      %v1558 = vpop.f32.mrf.mxu0
      %1559 = vmatprep.mubr.bf16.mxu0 0
      %1560 = vmatmul.mubr.bf16.gmra.mxu0 %v1506
      %v1561 = vpop.f32.mrf.mxu0
      %v1562 = vadd.f32 0.0, %v1561
      %v1563 = vpop.f32.mrf.mxu0
      %v1564 = vpop.f32.mrf.mxu0
      %v1565 = vadd.f32 0.0, %v1564
      %v1566 = vpop.f32.mrf.mxu0
      %1567 = vmatprep.mubr.bf16.mxu0 0
      %1568 = vmatmul.mubr.bf16.gmra.mxu0 %v1509
      %v1569 = vpop.f32.mrf.mxu0
      %v1570 = vadd.f32 0.0, %v1569
      %v1571 = vpop.f32.mrf.mxu0
      %v1572 = vpop.f32.mrf.mxu0
      %v1573 = vadd.f32 0.0, %v1572
      %v1574 = vpop.f32.mrf.mxu0
      %1575 = vdwg.mxu0
      %v1576 = vadd.f32 %v1392, %v1546
      %v1577 = vadd.f32 %v1395, %v1549
      %v1578 = vadd.f32 %v1400, %v1554
      %v1579 = vadd.f32 %v1403, %v1557
      %v1580 = vadd.f32 %v1408, %v1562
      %v1581 = vadd.f32 %v1411, %v1565
      %v1582 = vadd.f32 %v1416, %v1570
      %v1583 = vadd.f32 %v1419, %v1573
      %v1584 = vld [vmem:[%s7] sm:$0x1]
      %v1586 = vlaneseq
      %v1587 = vshrl.u32 %v1586, 7
      %v1588 = vsub.s32 0, %v1587
      %v1589 = vrot.slane %v1584, %v1588
      %v1591 = vadd.f32 %v1576, %v1589
      %v1592 = vadd.f32 %v1577, %v1589
      %v1593 = vadd.f32 %v1578, %v1589
      %v1594 = vadd.f32 %v1579, %v1589
      %v1595 = vadd.f32 %v1580, %v1589
      %v1596 = vadd.f32 %v1581, %v1589
      %v1597 = vadd.f32 %v1582, %v1589
      %v1598 = vadd.f32 %v1583, %v1589
      %vm1599 = vcmask 261120
      %1600 = vst.msk [vmem:[%s635] sm:$0xff] %vm1599, %v1591
      %1601 = vst.msk [vmem:[%s635 + $0x8] sm:$0xff] %vm1599, %v1592
      %1602 = vst.msk [vmem:[%s635 + $0x10] sm:$0xff] %vm1599, %v1593
      %1603 = vst.msk [vmem:[%s635 + $0x18] sm:$0xff] %vm1599, %v1594
      %1604 = vst.msk [vmem:[%s635 + $0x20] sm:$0xff] %vm1599, %v1595
      %1605 = vst.msk [vmem:[%s635 + $0x28] sm:$0xff] %vm1599, %v1596
      %1606 = vst.msk [vmem:[%s635 + $0x30] sm:$0xff] %vm1599, %v1597
      %1607 = vst.msk [vmem:[%s635 + $0x38] sm:$0xff] %vm1599, %v1598
      %s1608 = smul.u32 8, %s24
      %p1609 = scmp.lt.s32.totalorder %s23, 1
      %s1610 = scalar_select %p1609, %s23, 1
      %p1611 = scmp.lt.s32.totalorder %s1608, 31
      %s1612 = scalar_select %p1611, %s1608, 31
      %s1613 = smul.addr %s1610, 32
      %s1614 = sadd.s32 %s1612, %s1613
      %s1615 = smul.addr %s1614, 8
      %s1616 = scalar_lea.vmem %s8, %s1615
      // Predicated region
      $region53: #{tpu_custom_call.1} parent=51 // pred_check
        %p1617 = pneg %p293
      $region54: #{tpu_custom_call.1} parent=51 // pred_check_branch
        %1619 = sbr.rel (%p1617) target = $region56
      $region55: #{tpu_custom_call.1} parent=51 // pred_region
        %s1620 = smul.u32 8, %s24
      $region56: #{tpu_custom_call.1} parent=51 // pred_fallthru
        _
    $region52: #{tpu_custom_call.1} parent=5 // pred_fallthru
      _
    %p1621 = scmp.le.s32.totalorder 2, %s14
    // Predicated region
    $region57: #{tpu_custom_call.1} parent=5 // pred_check
      %p1622 = pneg %p1621
    $region58: #{tpu_custom_call.1} parent=5 // pred_check_branch
      %1624 = sbr.rel (%p1622) target = $region60
    $region59: #{tpu_custom_call.1} parent=5 // pred_region
      %s1625 = ssub.s32 %s14, 2
      // Predicated region
      $region61: #{tpu_custom_call.1} parent=59 // pred_check
        %p1626 = pneg %p299
      $region62: #{tpu_custom_call.1} parent=59 // pred_check_branch
        %1628 = sbr.rel (%p1626) target = $region64
      $region63: #{tpu_custom_call.1} parent=59 // pred_region
        %s1629 = smul.u32 8, %s26
        %p1630 = scmp.lt.s32.totalorder %s25, 1
        %s1631 = scalar_select %p1630, %s25, 1
        %p1632 = scmp.lt.s32.totalorder %s1629, 31
        %s1633 = scalar_select %p1632, %s1629, 31
        %s1634 = smul.addr %s1631, 32
        %s1635 = sadd.s32 %s1633, %s1634
        %s1636 = smul.addr %s1635, 8
        %s1637 = scalar_lea.vmem %s8, %s1636
      $region64: #{tpu_custom_call.1} parent=59 // pred_fallthru
        _
    $region60: #{tpu_custom_call.1} parent=5 // pred_fallthru
      _
  $region6: #{tpu_custom_call.1} parent=0 // loop_footer
    %s18 = sadd.s32 1, %s14
  $region7: #{tpu_custom_call.1} parent=0 // loop_footer_branch
    %13 = sbr.rel target = $region3
  $region8: #{tpu_custom_call.1} parent=0 // loop_exit
    _

</llo_original>
